<compile_context>
chip_gen: v7x
topology: tpu7x:2x2x1
jax: 0.10.0
libtpu: 0.0.40
codegen_flags: <defaults>
</compile_context>

<pallas_src>
import functools

import jax
import jax.numpy as jnp
from jax.experimental import pallas as pl
from jax.experimental.pallas import tpu as pltpu


# --------------------------------- kernel ------------------------------------
def conv_bn_relu_kernel(x_ref, w_ref, scale_ref, shift_ref, o_ref, col_ref, *,
                        KH, KW, Cin, H_out, W_out, stride):
    """Fused conv2d + BN(scale/shift) + ReLU for a batch slab.

    x_ref:     (Bblk, Hp, Wp, Cin)        padded NHWC input slab (VMEM)
    w_ref:     (K_pad, Cout_pad) bf16     conv weight, rows (kh, kw, cin), zero-padded
    scale_ref: (1, Cout_pad)              gamma / sqrt(running_var + eps)
    shift_ref: (1, Cout_pad)              beta + (conv_bias - running_mean) * scale
    o_ref:     (Bblk, H_out, W_out, Cout_pad)
    col_ref:   (Bblk*H_out*W_out, K_pad)  f32 VMEM scratch (im2col patches)
    """
    Bblk = o_ref.shape[0]
    Cout = o_ref.shape[-1]
    M = Bblk * H_out * W_out

    # Zero the scratch (also covers the K-padding lanes feeding zero weight rows).
    col_ref[...] = jnp.zeros_like(col_ref)

    # In-VMEM im2col, one (kh, kw) tap at a time.  Slicing the *ref* keeps only
    # one shifted slice live in vregs at a time (no big concatenate).
    def tap(start, n):
        return slice(start, start + n) if stride == 1 else pl.ds(start, n, stride)

    for kh in range(KH):
        for kw in range(KW):
            sl = x_ref[:, tap(kh, H_out), tap(kw, W_out), :]   # (Bblk, H_out, W_out, Cin)
            c0 = (kh * KW + kw) * Cin
            col_ref[:, c0:c0 + Cin] = sl.reshape(M, Cin)       # fold major dims only

    # Single MXU matmul over the whole receptive-field/channel reduction:
    # bf16 operands (MXU-native on v5e/v6e/v7x), explicit f32 accumulation.
    patches = col_ref[...].astype(jnp.bfloat16)                # (M, K_pad)
    acc = jnp.dot(patches, w_ref[...], preferred_element_type=jnp.float32)

    # Fused conv-bias + BatchNorm (eval) affine, then ReLU; lane-dense store.
    y = jnp.maximum(acc * scale_ref[0] + shift_ref[0], 0.0)
    o_ref[...] = y.reshape(Bblk, H_out, W_out, Cout)


# ------------------------- one-time parameter prep ---------------------------
def prepare_params(conv_w, conv_b, bn_gamma, bn_beta, bn_mean, bn_var, eps=1e-5):
    """Hoisted weight-side prep: run ONCE, not per forward call."""
    Cout, Cin, KH, KW = conv_w.shape
    K = KH * KW * Cin
    K_pad = ((K + 127) // 128) * 128
    Cout_pad = ((Cout + 127) // 128) * 128

    # (Cout, Cin, KH, KW) -> (KH, KW, Cin, Cout) -> (K, Cout); row order (kh, kw, cin)
    # matches the kernel's im2col column order. Zero-pad K and Cout, cast to bf16.
    w2d = jnp.transpose(conv_w, (2, 3, 1, 0)).reshape(K, Cout)
    w2d = jnp.pad(w2d, ((0, K_pad - K), (0, Cout_pad - Cout))).astype(jnp.bfloat16)

    # Fold conv bias + BatchNorm (eval mode) into per-channel scale & shift (f32).
    scale = (bn_gamma * jax.lax.rsqrt(bn_var + eps)).astype(jnp.float32)
    shift = (bn_beta + (conv_b - bn_mean) * scale).astype(jnp.float32)
    scale = jnp.pad(scale.reshape(1, Cout), ((0, 0), (0, Cout_pad - Cout)))
    shift = jnp.pad(shift.reshape(1, Cout), ((0, 0), (0, Cout_pad - Cout)))
    return w2d, scale, shift


# ------------------------------ fused forward ---------------------------------
def _conv_bn_relu_nhwc_impl(x_nhwc, w2d, scale, shift, *, stride, padding,
                            kernel_hw, cout):
    B, H, W, Cin = x_nhwc.shape
    KH, KW = kernel_hw
    H_out = (H + 2 * padding - KH) // stride + 1
    W_out = (W + 2 * padding - KW) // stride + 1
    Hp, Wp = H + 2 * padding, W + 2 * padding
    K_pad, Cout_pad = w2d.shape

    # Zero halo padding (fused into the jitted forward by XLA).
    xp = jnp.pad(x_nhwc, ((0, 0), (padding, padding), (padding, padding), (0, 0)))

    # Fold batch into the matmul M dim; 2-way "parallel" split keeps both v7x
    # TensorCores busy, while v5e/v6e pay at most 2 grid steps of overhead.
    G = 2 if (B % 2 == 0 and B >= 2) else 1
    Bblk = B // G
    M_blk = Bblk * H_out * W_out

    out = pl.pallas_call(
        functools.partial(conv_bn_relu_kernel, KH=KH, KW=KW, Cin=Cin,
                          H_out=H_out, W_out=W_out, stride=stride),
        out_shape=jax.ShapeDtypeStruct((B, H_out, W_out, Cout_pad), jnp.float32),
        grid=(G,),
        in_specs=[
            pl.BlockSpec((Bblk, Hp, Wp, Cin), lambda g: (g, 0, 0, 0)),
            pl.BlockSpec((K_pad, Cout_pad), lambda g: (0, 0)),
            pl.BlockSpec((1, Cout_pad), lambda g: (0, 0)),
            pl.BlockSpec((1, Cout_pad), lambda g: (0, 0)),
        ],
        out_specs=pl.BlockSpec((Bblk, H_out, W_out, Cout_pad),
                               lambda g: (g, 0, 0, 0)),
        scratch_shapes=[pltpu.VMEM((M_blk, K_pad), jnp.float32)],
        compiler_params=pltpu.CompilerParams(
            dimension_semantics=("parallel",),
            vmem_limit_bytes=32 * 1024 * 1024),
    )(xp, w2d, scale, shift)

    return out if cout == Cout_pad else out[..., :cout]


def _conv_bn_relu_nchw_impl(x_nchw, w2d, scale, shift, *, stride, padding,
                            kernel_hw, cout):
    # PyTorch-layout adapter (NCHW in / NCHW out); transposes are fused in-jit.
    x = jnp.transpose(x_nchw, (0, 2, 3, 1))
    y = _conv_bn_relu_nhwc_impl(x, w2d, scale, shift, stride=stride,
                                padding=padding, kernel_hw=kernel_hw, cout=cout)
    return jnp.transpose(y, (0, 3, 1, 2))


_STATICS = ("stride", "padding", "kernel_hw", "cout")
conv_bn_relu_nhwc = jax.jit(_conv_bn_relu_nhwc_impl, static_argnames=_STATICS)
conv_bn_relu_nchw = jax.jit(_conv_bn_relu_nchw_impl, static_argnames=_STATICS)


# --------------------------- pure-JAX reference (NCHW) ------------------------
def conv_bn_relu_reference(x, conv_w, conv_b, gamma, beta, mean, var, *,
                           stride, padding, eps=1e-5):
    y = jax.lax.conv_general_dilated(
        x, conv_w, (stride, stride), [(padding, padding), (padding, padding)],
        dimension_numbers=("NCHW", "OIHW", "NCHW"))
    y = y + conv_b.reshape(1, -1, 1, 1)
    inv = jax.lax.rsqrt(var.reshape(1, -1, 1, 1) + eps)
    y = (y - mean.reshape(1, -1, 1, 1)) * inv * gamma.reshape(1, -1, 1, 1) \
        + beta.reshape(1, -1, 1, 1)
    return jnp.maximum(y, 0.0)


# ------------------------------------ main ------------------------------------
if __name__ == "__main__":
    B, C_IN, H, W = 2, 4, 16, 16
    C_OUT, KSZ, STRIDE, PAD = 128, 3, 1, 1   # Cout=128 -> exactly lane-dense output

    key = jax.random.PRNGKey(0)
    ks = jax.random.split(key, 7)
    x_nchw = jax.random.normal(ks[0], (B, C_IN, H, W), jnp.float32)
    conv_w = 0.1 * jax.random.normal(ks[1], (C_OUT, C_IN, KSZ, KSZ), jnp.float32)
    conv_b = 0.1 * jax.random.normal(ks[2], (C_OUT,), jnp.float32)
    bn_gamma = 1.0 + 0.1 * jax.random.normal(ks[3], (C_OUT,), jnp.float32)
    bn_beta = 0.1 * jax.random.normal(ks[4], (C_OUT,), jnp.float32)
    bn_mean = 0.1 * jax.random.normal(ks[5], (C_OUT,), jnp.float32)
    bn_var = jnp.abs(1.0 + 0.1 * jax.random.normal(ks[6], (C_OUT,), jnp.float32))

    # One-time weight-side prep (hoisted out of the per-call path).
    w2d, scale, shift = prepare_params(conv_w, conv_b, bn_gamma, bn_beta,
                                       bn_mean, bn_var)

    # Fast path: channels-last in / channels-last out (no output transpose).
    x_nhwc = jnp.transpose(x_nchw, (0, 2, 3, 1))
    out_nhwc = jax.block_until_ready(
        conv_bn_relu_nhwc(x_nhwc, w2d, scale, shift, stride=STRIDE,
                          padding=PAD, kernel_hw=(KSZ, KSZ), cout=C_OUT))

    # PyTorch-layout adapter (module semantics: NCHW in / NCHW out).
    out_nchw = jax.block_until_ready(
        conv_bn_relu_nchw(x_nchw, w2d, scale, shift, stride=STRIDE,
                          padding=PAD, kernel_hw=(KSZ, KSZ), cout=C_OUT))

    ref_nchw = jax.block_until_ready(
        conv_bn_relu_reference(x_nchw, conv_w, conv_b, bn_gamma, bn_beta,
                               bn_mean, bn_var, stride=STRIDE, padding=PAD))
    ref_nhwc = jnp.transpose(ref_nchw, (0, 2, 3, 1))

    assert out_nhwc.shape == (B, H, W, C_OUT), out_nhwc.shape
    assert out_nchw.shape == (B, C_OUT, H, W), out_nchw.shape

    # bf16 MXU operands with f32 accumulation -> bf16-appropriate tolerance.
    err1 = float(jnp.max(jnp.abs(out_nhwc - ref_nhwc)))
    err2 = float(jnp.max(jnp.abs(out_nchw - ref_nchw)))
    assert jnp.allclose(out_nhwc, ref_nhwc, rtol=2e-2, atol=2e-2), f"max abs err = {err1}"
    assert jnp.allclose(out_nchw, ref_nchw, rtol=2e-2, atol=2e-2), f"max abs err = {err2}"
    print("KERNEL_OK")
</pallas_src>

<mosaic_0001>
module attributes {stable_mosaic.version = 11 : i64} {
  func.func @conv_bn_relu_kernel(%arg0: i32, %arg1: memref<1x18x18x4xf32, #tpu.memory_space<vmem>>, %arg2: memref<128x128xbf16, #tpu.memory_space<vmem>>, %arg3: memref<1x128xf32, #tpu.memory_space<vmem>>, %arg4: memref<1x128xf32, #tpu.memory_space<vmem>>, %arg5: memref<1x16x16x128xf32, #tpu.memory_space<vmem>>, %arg6: memref<256x128xf32, #tpu.memory_space<vmem>>) attributes {dimension_semantics = [#tpu.dimension_semantics<parallel>], iteration_bounds = array<i64: 2>, scalar_prefetch = 0 : i64, scratch_operands = 1 : i64, tpu.core_type = #tpu.core_type<tc>, window_params = [{transform_indices = @transform_0, window_bounds = array<i64: 1, 18, 18, 4>}, {pipeline_mode = #tpu.pipeline_mode<synchronous>, transform_indices = @transform_1, window_bounds = array<i64: 128, 128>}, {pipeline_mode = #tpu.pipeline_mode<synchronous>, transform_indices = @transform_2, window_bounds = array<i64: 1, 128>}, {pipeline_mode = #tpu.pipeline_mode<synchronous>, transform_indices = @transform_3, window_bounds = array<i64: 1, 128>}, {transform_indices = @transform_4, window_bounds = array<i64: 1, 16, 16, 128>}]} {
    %cst = arith.constant 0.000000e+00 : f32
    %0 = vector.broadcast %cst : f32 to vector<256x128xf32>
    %c0 = arith.constant 0 : index
    %c0_0 = arith.constant 0 : index
    %1 = vector.load %arg6[%c0, %c0_0] : memref<256x128xf32, #tpu.memory_space<vmem>>, vector<256x128xf32>
    tpu.vector_store %arg6[%c0, %c0_0], %0 {strides = array<i32>} : memref<256x128xf32, #tpu.memory_space<vmem>>, vector<256x128xf32>,
    %c0_1 = arith.constant 0 : index
    %c0_2 = arith.constant 0 : index
    %c0_3 = arith.constant 0 : index
    %c0_4 = arith.constant 0 : index
    %2 = vector.load %arg1[%c0_1, %c0_2, %c0_3, %c0_4] : memref<1x18x18x4xf32, #tpu.memory_space<vmem>>, vector<1x16x16x4xf32>
    %3 = vector.shape_cast %2 : vector<1x16x16x4xf32> to vector<256x4xf32>
    %c0_5 = arith.constant 0 : index
    %c0_6 = arith.constant 0 : index
    %4 = vector.load %arg6[%c0_5, %c0_6] : memref<256x128xf32, #tpu.memory_space<vmem>>, vector<256x4xf32>
    tpu.vector_store %arg6[%c0_5, %c0_6], %3 {strides = array<i32>} : memref<256x128xf32, #tpu.memory_space<vmem>>, vector<256x4xf32>,
    %c0_7 = arith.constant 0 : index
    %c0_8 = arith.constant 0 : index
    %c1 = arith.constant 1 : index
    %c0_9 = arith.constant 0 : index
    %5 = vector.load %arg1[%c0_7, %c0_8, %c1, %c0_9] : memref<1x18x18x4xf32, #tpu.memory_space<vmem>>, vector<1x16x16x4xf32>
    %6 = vector.shape_cast %5 : vector<1x16x16x4xf32> to vector<256x4xf32>
    %c0_10 = arith.constant 0 : index
    %c4 = arith.constant 4 : index
    %7 = vector.load %arg6[%c0_10, %c4] : memref<256x128xf32, #tpu.memory_space<vmem>>, vector<256x4xf32>
    tpu.vector_store %arg6[%c0_10, %c4], %6 {strides = array<i32>} : memref<256x128xf32, #tpu.memory_space<vmem>>, vector<256x4xf32>,
    %c0_11 = arith.constant 0 : index
    %c0_12 = arith.constant 0 : index
    %c2 = arith.constant 2 : index
    %c0_13 = arith.constant 0 : index
    %8 = vector.load %arg1[%c0_11, %c0_12, %c2, %c0_13] : memref<1x18x18x4xf32, #tpu.memory_space<vmem>>, vector<1x16x16x4xf32>
    %9 = vector.shape_cast %8 : vector<1x16x16x4xf32> to vector<256x4xf32>
    %c0_14 = arith.constant 0 : index
    %c8 = arith.constant 8 : index
    %10 = vector.load %arg6[%c0_14, %c8] : memref<256x128xf32, #tpu.memory_space<vmem>>, vector<256x4xf32>
    tpu.vector_store %arg6[%c0_14, %c8], %9 {strides = array<i32>} : memref<256x128xf32, #tpu.memory_space<vmem>>, vector<256x4xf32>,
    %c0_15 = arith.constant 0 : index
    %c1_16 = arith.constant 1 : index
    %c0_17 = arith.constant 0 : index
    %c0_18 = arith.constant 0 : index
    %11 = vector.load %arg1[%c0_15, %c1_16, %c0_17, %c0_18] : memref<1x18x18x4xf32, #tpu.memory_space<vmem>>, vector<1x16x16x4xf32>
    %12 = vector.shape_cast %11 : vector<1x16x16x4xf32> to vector<256x4xf32>
    %c0_19 = arith.constant 0 : index
    %c12 = arith.constant 12 : index
    %13 = vector.load %arg6[%c0_19, %c12] : memref<256x128xf32, #tpu.memory_space<vmem>>, vector<256x4xf32>
    tpu.vector_store %arg6[%c0_19, %c12], %12 {strides = array<i32>} : memref<256x128xf32, #tpu.memory_space<vmem>>, vector<256x4xf32>,
    %c0_20 = arith.constant 0 : index
    %c1_21 = arith.constant 1 : index
    %c1_22 = arith.constant 1 : index
    %c0_23 = arith.constant 0 : index
    %14 = vector.load %arg1[%c0_20, %c1_21, %c1_22, %c0_23] : memref<1x18x18x4xf32, #tpu.memory_space<vmem>>, vector<1x16x16x4xf32>
    %15 = vector.shape_cast %14 : vector<1x16x16x4xf32> to vector<256x4xf32>
    %c0_24 = arith.constant 0 : index
    %c16 = arith.constant 16 : index
    %16 = vector.load %arg6[%c0_24, %c16] : memref<256x128xf32, #tpu.memory_space<vmem>>, vector<256x4xf32>
    tpu.vector_store %arg6[%c0_24, %c16], %15 {strides = array<i32>} : memref<256x128xf32, #tpu.memory_space<vmem>>, vector<256x4xf32>,
    %c0_25 = arith.constant 0 : index
    %c1_26 = arith.constant 1 : index
    %c2_27 = arith.constant 2 : index
    %c0_28 = arith.constant 0 : index
    %17 = vector.load %arg1[%c0_25, %c1_26, %c2_27, %c0_28] : memref<1x18x18x4xf32, #tpu.memory_space<vmem>>, vector<1x16x16x4xf32>
    %18 = vector.shape_cast %17 : vector<1x16x16x4xf32> to vector<256x4xf32>
    %c0_29 = arith.constant 0 : index
    %c20 = arith.constant 20 : index
    %19 = vector.load %arg6[%c0_29, %c20] : memref<256x128xf32, #tpu.memory_space<vmem>>, vector<256x4xf32>
    tpu.vector_store %arg6[%c0_29, %c20], %18 {strides = array<i32>} : memref<256x128xf32, #tpu.memory_space<vmem>>, vector<256x4xf32>,
    %c0_30 = arith.constant 0 : index
    %c2_31 = arith.constant 2 : index
    %c0_32 = arith.constant 0 : index
    %c0_33 = arith.constant 0 : index
    %20 = vector.load %arg1[%c0_30, %c2_31, %c0_32, %c0_33] : memref<1x18x18x4xf32, #tpu.memory_space<vmem>>, vector<1x16x16x4xf32>
    %21 = vector.shape_cast %20 : vector<1x16x16x4xf32> to vector<256x4xf32>
    %c0_34 = arith.constant 0 : index
    %c24 = arith.constant 24 : index
    %22 = vector.load %arg6[%c0_34, %c24] : memref<256x128xf32, #tpu.memory_space<vmem>>, vector<256x4xf32>
    tpu.vector_store %arg6[%c0_34, %c24], %21 {strides = array<i32>} : memref<256x128xf32, #tpu.memory_space<vmem>>, vector<256x4xf32>,
    %c0_35 = arith.constant 0 : index
    %c2_36 = arith.constant 2 : index
    %c1_37 = arith.constant 1 : index
    %c0_38 = arith.constant 0 : index
    %23 = vector.load %arg1[%c0_35, %c2_36, %c1_37, %c0_38] : memref<1x18x18x4xf32, #tpu.memory_space<vmem>>, vector<1x16x16x4xf32>
    %24 = vector.shape_cast %23 : vector<1x16x16x4xf32> to vector<256x4xf32>
    %c0_39 = arith.constant 0 : index
    %c28 = arith.constant 28 : index
    %25 = vector.load %arg6[%c0_39, %c28] : memref<256x128xf32, #tpu.memory_space<vmem>>, vector<256x4xf32>
    tpu.vector_store %arg6[%c0_39, %c28], %24 {strides = array<i32>} : memref<256x128xf32, #tpu.memory_space<vmem>>, vector<256x4xf32>,
    %c0_40 = arith.constant 0 : index
    %c2_41 = arith.constant 2 : index
    %c2_42 = arith.constant 2 : index
    %c0_43 = arith.constant 0 : index
    %26 = vector.load %arg1[%c0_40, %c2_41, %c2_42, %c0_43] : memref<1x18x18x4xf32, #tpu.memory_space<vmem>>, vector<1x16x16x4xf32>
    %27 = vector.shape_cast %26 : vector<1x16x16x4xf32> to vector<256x4xf32>
    %c0_44 = arith.constant 0 : index
    %c32 = arith.constant 32 : index
    %28 = vector.load %arg6[%c0_44, %c32] : memref<256x128xf32, #tpu.memory_space<vmem>>, vector<256x4xf32>
    tpu.vector_store %arg6[%c0_44, %c32], %27 {strides = array<i32>} : memref<256x128xf32, #tpu.memory_space<vmem>>, vector<256x4xf32>,
    %c0_45 = arith.constant 0 : index
    %c0_46 = arith.constant 0 : index
    %29 = vector.load %arg6[%c0_45, %c0_46] : memref<256x128xf32, #tpu.memory_space<vmem>>, vector<256x128xf32>
    %30 = arith.truncf %29 : vector<256x128xf32> to vector<256x128xbf16>
    %c0_47 = arith.constant 0 : index
    %c0_48 = arith.constant 0 : index
    %31 = vector.load %arg2[%c0_47, %c0_48] : memref<128x128xbf16, #tpu.memory_space<vmem>>, vector<128x128xbf16>
    %cst_49 = arith.constant dense<0.000000e+00> : vector<256x128xf32>
    %32 = tpu.matmul %30, %31, %cst_49 {dimension_numbers = #tpu.dot_dimension_numbers<[1], [0], [0], [1], [0, 0, 1, 1], [], []>} : vector<256x128xbf16>, vector<128x128xbf16>, vector<256x128xf32> -> vector<256x128xf32>
    %c0_50 = arith.constant 0 : index
    %c0_51 = arith.constant 0 : index
    %33 = vector.load %arg3[%c0_50, %c0_51] : memref<1x128xf32, #tpu.memory_space<vmem>>, vector<1x128xf32>
    %34 = vector.shape_cast %33 : vector<1x128xf32> to vector<128xf32>
    %35 = vector.shape_cast %34 : vector<128xf32> to vector<1x128xf32>
    %36 = vector.broadcast %35 : vector<1x128xf32> to vector<256x128xf32>
    %37 = arith.mulf %32, %36 : vector<256x128xf32>
    %c0_52 = arith.constant 0 : index
    %c0_53 = arith.constant 0 : index
    %38 = vector.load %arg4[%c0_52, %c0_53] : memref<1x128xf32, #tpu.memory_space<vmem>>, vector<1x128xf32>
    %39 = vector.shape_cast %38 : vector<1x128xf32> to vector<128xf32>
    %40 = vector.shape_cast %39 : vector<128xf32> to vector<1x128xf32>
    %41 = vector.broadcast %40 : vector<1x128xf32> to vector<256x128xf32>
    %42 = arith.addf %37, %41 : vector<256x128xf32>
    %cst_54 = arith.constant 0.000000e+00 : f32
    %43 = vector.broadcast %cst_54 : f32 to vector<256x128xf32>
    %44 = arith.maximumf %42, %43 : vector<256x128xf32>
    %45 = vector.shape_cast %44 : vector<256x128xf32> to vector<1x16x16x128xf32>
    %c0_55 = arith.constant 0 : index
    %c0_56 = arith.constant 0 : index
    %c0_57 = arith.constant 0 : index
    %c0_58 = arith.constant 0 : index
    %46 = vector.load %arg5[%c0_55, %c0_56, %c0_57, %c0_58] : memref<1x16x16x128xf32, #tpu.memory_space<vmem>>, vector<1x16x16x128xf32>
    tpu.vector_store %arg5[%c0_55, %c0_56, %c0_57, %c0_58], %45 {strides = array<i32>} : memref<1x16x16x128xf32, #tpu.memory_space<vmem>>, vector<1x16x16x128xf32>,
    return
  }
  func.func @transform_0(%arg0: i32) -> (i32, i32, i32, i32) {
    %c0_i32 = arith.constant 0 : i32
    %c0_i32_0 = arith.constant 0 : i32
    %c0_i32_1 = arith.constant 0 : i32
    %c0_i32_2 = arith.constant 0 : i32
    return %arg0, %c0_i32, %c0_i32_0, %c0_i32_1 : i32, i32, i32, i32
  }
  func.func @transform_1(%arg0: i32) -> (i32, i32) {
    %c0_i32 = arith.constant 0 : i32
    %c0_i32_0 = arith.constant 0 : i32
    %c0_i32_1 = arith.constant 0 : i32
    return %c0_i32, %c0_i32_0 : i32, i32
  }
  func.func @transform_2(%arg0: i32) -> (i32, i32) {
    %c0_i32 = arith.constant 0 : i32
    %c0_i32_0 = arith.constant 0 : i32
    %c0_i32_1 = arith.constant 0 : i32
    return %c0_i32, %c0_i32_0 : i32, i32
  }
  func.func @transform_3(%arg0: i32) -> (i32, i32) {
    %c0_i32 = arith.constant 0 : i32
    %c0_i32_0 = arith.constant 0 : i32
    %c0_i32_1 = arith.constant 0 : i32
    return %c0_i32, %c0_i32_0 : i32, i32
  }
  func.func @transform_4(%arg0: i32) -> (i32, i32, i32, i32) {
    %c0_i32 = arith.constant 0 : i32
    %c0_i32_0 = arith.constant 0 : i32
    %c0_i32_1 = arith.constant 0 : i32
    %c0_i32_2 = arith.constant 0 : i32
    return %arg0, %c0_i32, %c0_i32_0, %c0_i32_1 : i32, i32, i32, i32
  }
}

</mosaic_0001>

<llo_original>
// kernel: _conv_bn_relu_nhwc_impl.1
$region0: #{_conv_bn_relu_nhwc_impl.1}
  #allocation0 [shape = 'u32[]', space=smem, size = 0x4, offset = 0x4, fixed_abs, tag = 'smem constant byte address 0x4 - core index']
  #allocation1 [shape = 'u32[144,128]{1,0:T(1,128)}', space=vmem, size = 0x12000, scoped, tag = 'internal scratch']
  #allocation2 [shape = 'f32[256,128]{1,0:T(8,128)}', space=vmem, size = 0x20000, scoped, tag = 'scratch operand']
  %s0 = inlined_call_operand.vmem [shape: f32[2,18,18,4], index: 0, kind: input, shape index: {}]
  %s1 = inlined_call_operand.vmem [shape: bf16[128,128], index: 1, kind: input, shape index: {}]
  %s2 = inlined_call_operand.vmem [shape: f32[1,128], index: 2, kind: input, shape index: {}]
  %s3 = inlined_call_operand.vmem [shape: f32[1,128], index: 3, kind: input, shape index: {}]
  %s4 = inlined_call_operand.hbm [shape: f32[2,16,16,128], index: 4, kind: output, shape index: {}]
  %s5 = sld [smem:[#allocation0]]
  $region49: #{_conv_bn_relu_nhwc_impl.1} parent=0
    _
  %s7 = ssub.s32 1, %s5
  %s8 = scalar_select 0, %s7, %s5
  $region1: #{_conv_bn_relu_nhwc_impl.1} parent=0
    #allocation3 [shape = 'u8[262144]{0}', space=vmem, size = 0x40000, scoped, tag = 'output window, operand 0']
    #allocation4 [shape = 's32[2]{0}', space=sflag, size = 0x8, scoped, tag = 'scoped memory for _conv_bn_relu_nhwc_impl.1']
    %9 = vsyncpa [#allocation4], 0
    %s10 = scalar_lea.sflag [#allocation4], 1
    %11 = vsyncpa %s10, 0
    loop: start=0, step=1, limit=4
    $region2: #{_conv_bn_relu_nhwc_impl.1} parent=1 // loop_pre_header
      _
    $region3: #{_conv_bn_relu_nhwc_impl.1} parent=1 // loop_header
      %s13 = sphi 0, %s17
      %p14 = scmp.ge.s32.totalorder %s13, 4
      %s23 = sphi 0, %s25
      %s26 = sphi 0, %s23
      %s27 = sphi 0, %s26
      %s43 = sphi 0, %s27
      %s47 = sphi 0, %s47
      %s49 = sphi 0, %s47
      %s50 = sphi 0, %s49
      %s64 = sphi 0, %s50
      %s68 = sphi 0, %s68
      %s70 = sphi 0, %s68
      %s71 = sphi 0, %s70
      %s85 = sphi 0, %s71
      %s89 = sphi 0, %s89
      %s91 = sphi 0, %s89
      %s92 = sphi 0, %s91
      %s106 = sphi 0, %s92
      %s112 = sphi 0, %s114
      %s115 = sphi 0, %s112
      %s116 = sphi 0, %s115
      %s132 = sphi 0, %s116
    $region4: #{_conv_bn_relu_nhwc_impl.1} parent=1 // loop_header_branch
      %16 = sbr.rel (%p14) target = $region8
    $region5: #{_conv_bn_relu_nhwc_impl.1} parent=1 // loop_body
      %s18 = ssub.s32 %s13, 1
      %s19 = ssub.s32 %s13, 2
      %s20 = sadd.s32 %s13, 1
      %s21 = ssub.s32 %s13, %s20
      %p22 = scmp.eq.s32.totalorder %s21, 0
      %s24 = sadd.s32 %s23, 1
      %s25 = scalar_select %p22, %s23, %s24
      %p28 = pneg %p22
      %p29 = scmp.eq.s32.totalorder %s13, 1
      %p30 = por %p28, %p29
      %p31 = scmp.ne.s32.totalorder %s23, %s26
      %p32 = scmp.eq.s32.totalorder %s13, 0
      %p33 = por %p31, %p32
      %p34 = scmp.ne.s32.totalorder %s23, %s26
      %p35 = scmp.eq.s32.totalorder %s18, 1
      %p36 = por %p34, %p35
      %p37 = scmp.ne.s32.totalorder %s26, %s27
      %p38 = scmp.eq.s32.totalorder %s18, 0
      %p39 = por %p37, %p38
      %p40 = scmp.ne.s32.totalorder %s26, %s27
      %p41 = scmp.eq.s32.totalorder %s19, 1
      %p42 = por %p40, %p41
      %p44 = scmp.ne.s32.totalorder %s27, %s43
      %p45 = scmp.eq.s32.totalorder %s19, 0
      %p46 = por %p44, %p45
      %s48 = sadd.s32 %s47, 1
      %p51 = scmp.eq.s32.totalorder %s13, 1
      %p52 = scmp.ne.s32.totalorder %s47, %s49
      %p53 = scmp.eq.s32.totalorder %s13, 0
      %p54 = por %p52, %p53
      %p55 = scmp.ne.s32.totalorder %s47, %s49
      %p56 = scmp.eq.s32.totalorder %s18, 1
      %p57 = por %p55, %p56
      %p58 = scmp.ne.s32.totalorder %s49, %s50
      %p59 = scmp.eq.s32.totalorder %s18, 0
      %p60 = por %p58, %p59
      %p61 = scmp.ne.s32.totalorder %s49, %s50
      %p62 = scmp.eq.s32.totalorder %s19, 1
      %p63 = por %p61, %p62
      %p65 = scmp.ne.s32.totalorder %s50, %s64
      %p66 = scmp.eq.s32.totalorder %s19, 0
      %p67 = por %p65, %p66
      %s69 = sadd.s32 %s68, 1
      %p72 = scmp.eq.s32.totalorder %s13, 1
      %p73 = scmp.ne.s32.totalorder %s68, %s70
      %p74 = scmp.eq.s32.totalorder %s13, 0
      %p75 = por %p73, %p74
      %p76 = scmp.ne.s32.totalorder %s68, %s70
      %p77 = scmp.eq.s32.totalorder %s18, 1
      %p78 = por %p76, %p77
      %p79 = scmp.ne.s32.totalorder %s70, %s71
      %p80 = scmp.eq.s32.totalorder %s18, 0
      %p81 = por %p79, %p80
      %p82 = scmp.ne.s32.totalorder %s70, %s71
      %p83 = scmp.eq.s32.totalorder %s19, 1
      %p84 = por %p82, %p83
      %p86 = scmp.ne.s32.totalorder %s71, %s85
      %p87 = scmp.eq.s32.totalorder %s19, 0
      %p88 = por %p86, %p87
      %s90 = sadd.s32 %s89, 1
      %p93 = scmp.eq.s32.totalorder %s13, 1
      %p94 = scmp.ne.s32.totalorder %s89, %s91
      %p95 = scmp.eq.s32.totalorder %s13, 0
      %p96 = por %p94, %p95
      %p97 = scmp.ne.s32.totalorder %s89, %s91
      %p98 = scmp.eq.s32.totalorder %s18, 1
      %p99 = por %p97, %p98
      %p100 = scmp.ne.s32.totalorder %s91, %s92
      %p101 = scmp.eq.s32.totalorder %s18, 0
      %p102 = por %p100, %p101
      %p103 = scmp.ne.s32.totalorder %s91, %s92
      %p104 = scmp.eq.s32.totalorder %s19, 1
      %p105 = por %p103, %p104
      %p107 = scmp.ne.s32.totalorder %s92, %s106
      %p108 = scmp.eq.s32.totalorder %s19, 0
      %p109 = por %p107, %p108
      %s110 = ssub.s32 %s13, %s20
      %p111 = scmp.eq.s32.totalorder %s110, 0
      %s113 = sadd.s32 %s112, 1
      %s114 = scalar_select %p111, %s112, %s113
      %p117 = pneg %p111
      %p118 = scmp.eq.s32.totalorder %s13, 1
      %p119 = por %p117, %p118
      %p120 = scmp.ne.s32.totalorder %s112, %s115
      %p121 = scmp.eq.s32.totalorder %s13, 0
      %p122 = por %p120, %p121
      %p123 = scmp.ne.s32.totalorder %s112, %s115
      %p124 = scmp.eq.s32.totalorder %s18, 1
      %p125 = por %p123, %p124
      %p126 = scmp.ne.s32.totalorder %s115, %s116
      %p127 = scmp.eq.s32.totalorder %s18, 0
      %p128 = por %p126, %p127
      %p129 = scmp.ne.s32.totalorder %s115, %s116
      %p130 = scmp.eq.s32.totalorder %s19, 1
      %p131 = por %p129, %p130
      %p133 = scmp.ne.s32.totalorder %s116, %s132
      %p134 = scmp.eq.s32.totalorder %s19, 0
      %p135 = por %p133, %p134
      %p136 = scmp.le.s32.totalorder 1, %s13
      %p137 = scmp.lt.s32.totalorder %s13, 3
      %p138 = pnand %p136, %p137
      %p139 = pneg %p138
      // Predicated region
      $region9: #{_conv_bn_relu_nhwc_impl.1} parent=5 // pred_check
        _
      $region10: #{_conv_bn_relu_nhwc_impl.1} parent=5 // pred_check_branch
        %141 = sbr.rel (%p138) target = $region12
      $region11: #{_conv_bn_relu_nhwc_impl.1} parent=5 // pred_region
        %s142 = ssub.s32 %s13, 1
        // Predicated region
        $region13: #{_conv_bn_relu_nhwc_impl.1} parent=11 // pred_check
          %p143 = pneg %p60
        $region14: #{_conv_bn_relu_nhwc_impl.1} parent=11 // pred_check_branch
          %145 = sbr.rel (%p143) target = $region16
        $region15: #{_conv_bn_relu_nhwc_impl.1} parent=11 // pred_region
          _
        $region16: #{_conv_bn_relu_nhwc_impl.1} parent=11 // pred_fallthru
          _
        // Predicated region
        $region17: #{_conv_bn_relu_nhwc_impl.1} parent=11 // pred_check
          %p146 = pneg %p81
        $region18: #{_conv_bn_relu_nhwc_impl.1} parent=11 // pred_check_branch
          %148 = sbr.rel (%p146) target = $region20
        $region19: #{_conv_bn_relu_nhwc_impl.1} parent=11 // pred_region
          _
        $region20: #{_conv_bn_relu_nhwc_impl.1} parent=11 // pred_fallthru
          _
        // Predicated region
        $region21: #{_conv_bn_relu_nhwc_impl.1} parent=11 // pred_check
          %p149 = pneg %p102
        $region22: #{_conv_bn_relu_nhwc_impl.1} parent=11 // pred_check_branch
          %151 = sbr.rel (%p149) target = $region24
        $region23: #{_conv_bn_relu_nhwc_impl.1} parent=11 // pred_region
          _
        $region24: #{_conv_bn_relu_nhwc_impl.1} parent=11 // pred_fallthru
          _
      $region12: #{_conv_bn_relu_nhwc_impl.1} parent=5 // pred_fallthru
        _
      %p152 = scmp.lt.s32.totalorder %s13, 2
      // Predicated region
      $region25: #{_conv_bn_relu_nhwc_impl.1} parent=5 // pred_check
        %p153 = pneg %p152
      $region26: #{_conv_bn_relu_nhwc_impl.1} parent=5 // pred_check_branch
        %155 = sbr.rel (%p153) target = $region28
      $region27: #{_conv_bn_relu_nhwc_impl.1} parent=5 // pred_region
        // Predicated region
        $region29: #{_conv_bn_relu_nhwc_impl.1} parent=27 // pred_check
          %p156 = pneg %p33
        $region30: #{_conv_bn_relu_nhwc_impl.1} parent=27 // pred_check_branch
          %158 = sbr.rel (%p156) target = $region32
        $region31: #{_conv_bn_relu_nhwc_impl.1} parent=27 // pred_region
          %p159 = scmp.lt.s32.totalorder %s13, 1
          %s160 = scalar_select %p159, %s13, 1
          %s161 = smul.addr %s160, 54
          %s162 = smul.addr %s161, 8
          %s163 = scalar_lea.vmem %s0, %s162
        $region32: #{_conv_bn_relu_nhwc_impl.1} parent=27 // pred_fallthru
          _
      $region28: #{_conv_bn_relu_nhwc_impl.1} parent=5 // pred_fallthru
        _
      %p164 = scmp.le.s32.totalorder 1, %s13
      %p165 = scmp.lt.s32.totalorder %s13, 3
      %p166 = pnand %p164, %p165
      %p167 = pneg %p166
      // Predicated region
      $region33: #{_conv_bn_relu_nhwc_impl.1} parent=5 // pred_check
        _
      $region34: #{_conv_bn_relu_nhwc_impl.1} parent=5 // pred_check_branch
        %169 = sbr.rel (%p166) target = $region36
      $region35: #{_conv_bn_relu_nhwc_impl.1} parent=5 // pred_region
        %s170 = ssub.s32 %s13, 1
        %p171 = scmp.lt.s32.totalorder %s18, 1
        %s172 = scalar_select %p171, %s18, 1
        %s173 = smul.addr %s172, 54
        %s174 = smul.addr %s173, 8
        %s175 = scalar_lea.vmem %s0, %s174
        %p176 = pneg %p39
        %p177 = pneg %p36
        %p178 = pneg %p60
        %p179 = pneg %p57
        %p180 = pneg %p81
        %p181 = pneg %p78
        %p182 = pneg %p102
        %p183 = pneg %p99
        %p184 = pneg %p128
        %p185 = pneg %p125
        %s186 = sand.u32 %s115, 1
        %s187 = scalar_lea.sflag [#allocation4], %s186
        %s188 = sand.u32 %s115, 1
        %s189 = smul.addr %s188, 256
        %s190 = scalar_lea.vmem [#allocation3], %s189
        %p191 = scmp.lt.s32.totalorder %s18, 1
        %s192 = scalar_select %p191, %s18, 1
        %s193 = smul.addr %s192, 54
        %s194 = smul.addr %s193, 8
        %s195 = scalar_lea.vmem %s0, %s194
        %197 = vst [vmem:[#allocation2] sm:$0xff] 0.0
        %198 = vst [vmem:[#allocation2 + $0x8] sm:$0xff] 0.0
        %199 = vst [vmem:[#allocation2 + $0x10] sm:$0xff] 0.0
        %200 = vst [vmem:[#allocation2 + $0x18] sm:$0xff] 0.0
        %201 = vst [vmem:[#allocation2 + $0x20] sm:$0xff] 0.0
        %202 = vst [vmem:[#allocation2 + $0x28] sm:$0xff] 0.0
        %203 = vst [vmem:[#allocation2 + $0x30] sm:$0xff] 0.0
        %204 = vst [vmem:[#allocation2 + $0x38] sm:$0xff] 0.0
        %205 = vst [vmem:[#allocation2 + $0x40] sm:$0xff] 0.0
        %206 = vst [vmem:[#allocation2 + $0x48] sm:$0xff] 0.0
        %207 = vst [vmem:[#allocation2 + $0x50] sm:$0xff] 0.0
        %208 = vst [vmem:[#allocation2 + $0x58] sm:$0xff] 0.0
        %209 = vst [vmem:[#allocation2 + $0x60] sm:$0xff] 0.0
        %210 = vst [vmem:[#allocation2 + $0x68] sm:$0xff] 0.0
        %211 = vst [vmem:[#allocation2 + $0x70] sm:$0xff] 0.0
        %212 = vst [vmem:[#allocation2 + $0x78] sm:$0xff] 0.0
        %213 = vst [vmem:[#allocation2 + $0x80] sm:$0xff] 0.0
        %214 = vst [vmem:[#allocation2 + $0x88] sm:$0xff] 0.0
        %215 = vst [vmem:[#allocation2 + $0x90] sm:$0xff] 0.0
        %216 = vst [vmem:[#allocation2 + $0x98] sm:$0xff] 0.0
        %217 = vst [vmem:[#allocation2 + $0xa0] sm:$0xff] 0.0
        %218 = vst [vmem:[#allocation2 + $0xa8] sm:$0xff] 0.0
        %219 = vst [vmem:[#allocation2 + $0xb0] sm:$0xff] 0.0
        %220 = vst [vmem:[#allocation2 + $0xb8] sm:$0xff] 0.0
        %221 = vst [vmem:[#allocation2 + $0xc0] sm:$0xff] 0.0
        %222 = vst [vmem:[#allocation2 + $0xc8] sm:$0xff] 0.0
        %223 = vst [vmem:[#allocation2 + $0xd0] sm:$0xff] 0.0
        %224 = vst [vmem:[#allocation2 + $0xd8] sm:$0xff] 0.0
        %225 = vst [vmem:[#allocation2 + $0xe0] sm:$0xff] 0.0
        %226 = vst [vmem:[#allocation2 + $0xe8] sm:$0xff] 0.0
        %227 = vst [vmem:[#allocation2 + $0xf0] sm:$0xff] 0.0
        %228 = vst [vmem:[#allocation2 + $0xf8] sm:$0xff] 0.0
        %v229 = vld [vmem:[%s195] sm:$0xff]
        %v230 = vld [vmem:[%s195 + $0x8] sm:$0xff]
        %v231 = vld [vmem:[%s195 + $0x18] sm:$0xff]
        %v232 = vld [vmem:[%s195 + $0x20] sm:$0xff]
        %v233 = vld [vmem:[%s195 + $0x30] sm:$0xff]
        %v234 = vld [vmem:[%s195 + $0x38] sm:$0xff]
        %v235 = vld [vmem:[%s195 + $0x48] sm:$0xff]
        %v236 = vld [vmem:[%s195 + $0x50] sm:$0xff]
        %v237 = vld [vmem:[%s195 + $0x60] sm:$0xff]
        %v238 = vld [vmem:[%s195 + $0x68] sm:$0xff]
        %v239 = vld [vmem:[%s195 + $0x78] sm:$0xff]
        %v240 = vld [vmem:[%s195 + $0x80] sm:$0xff]
        %v241 = vld [vmem:[%s195 + $0x90] sm:$0xff]
        %v242 = vld [vmem:[%s195 + $0x98] sm:$0xff]
        %v243 = vld [vmem:[%s195 + $0xa8] sm:$0xff]
        %v244 = vld [vmem:[%s195 + $0xb0] sm:$0xff]
        %v245 = vld [vmem:[%s195 + $0xc0] sm:$0xff]
        %v246 = vld [vmem:[%s195 + $0xc8] sm:$0xff]
        %v247 = vld [vmem:[%s195 + $0xd8] sm:$0xff]
        %v248 = vld [vmem:[%s195 + $0xe0] sm:$0xff]
        %v249 = vld [vmem:[%s195 + $0xf0] sm:$0xff]
        %v250 = vld [vmem:[%s195 + $0xf8] sm:$0xff]
        %v251 = vld [vmem:[%s195 + $0x108] sm:$0xff]
        %v252 = vld [vmem:[%s195 + $0x110] sm:$0xff]
        %v253 = vld [vmem:[%s195 + $0x120] sm:$0xff]
        %v254 = vld [vmem:[%s195 + $0x128] sm:$0xff]
        %v255 = vld [vmem:[%s195 + $0x138] sm:$0xff]
        %v256 = vld [vmem:[%s195 + $0x140] sm:$0xff]
        %v257 = vld [vmem:[%s195 + $0x150] sm:$0xff]
        %v258 = vld [vmem:[%s195 + $0x158] sm:$0xff]
        %v259 = vld [vmem:[%s195 + $0x168] sm:$0xff]
        %v260 = vld [vmem:[%s195 + $0x170] sm:$0xff]
        %vm261 = vcmask 31744
        %262 = vst.msk [vmem:[#allocation2] sm:$0xff] %vm261, %v229
        %263 = vst.msk [vmem:[#allocation2 + $0x8] sm:$0xff] %vm261, %v230
        %264 = vst.msk [vmem:[#allocation2 + $0x10] sm:$0xff] %vm261, %v231
        %265 = vst.msk [vmem:[#allocation2 + $0x18] sm:$0xff] %vm261, %v232
        %266 = vst.msk [vmem:[#allocation2 + $0x20] sm:$0xff] %vm261, %v233
        %267 = vst.msk [vmem:[#allocation2 + $0x28] sm:$0xff] %vm261, %v234
        %268 = vst.msk [vmem:[#allocation2 + $0x30] sm:$0xff] %vm261, %v235
        %269 = vst.msk [vmem:[#allocation2 + $0x38] sm:$0xff] %vm261, %v236
        %270 = vst.msk [vmem:[#allocation2 + $0x40] sm:$0xff] %vm261, %v237
        %271 = vst.msk [vmem:[#allocation2 + $0x48] sm:$0xff] %vm261, %v238
        %272 = vst.msk [vmem:[#allocation2 + $0x50] sm:$0xff] %vm261, %v239
        %273 = vst.msk [vmem:[#allocation2 + $0x58] sm:$0xff] %vm261, %v240
        %274 = vst.msk [vmem:[#allocation2 + $0x60] sm:$0xff] %vm261, %v241
        %275 = vst.msk [vmem:[#allocation2 + $0x68] sm:$0xff] %vm261, %v242
        %276 = vst.msk [vmem:[#allocation2 + $0x70] sm:$0xff] %vm261, %v243
        %277 = vst.msk [vmem:[#allocation2 + $0x78] sm:$0xff] %vm261, %v244
        %278 = vst.msk [vmem:[#allocation2 + $0x80] sm:$0xff] %vm261, %v245
        %279 = vst.msk [vmem:[#allocation2 + $0x88] sm:$0xff] %vm261, %v246
        %280 = vst.msk [vmem:[#allocation2 + $0x90] sm:$0xff] %vm261, %v247
        %281 = vst.msk [vmem:[#allocation2 + $0x98] sm:$0xff] %vm261, %v248
        %282 = vst.msk [vmem:[#allocation2 + $0xa0] sm:$0xff] %vm261, %v249
        %283 = vst.msk [vmem:[#allocation2 + $0xa8] sm:$0xff] %vm261, %v250
        %284 = vst.msk [vmem:[#allocation2 + $0xb0] sm:$0xff] %vm261, %v251
        %285 = vst.msk [vmem:[#allocation2 + $0xb8] sm:$0xff] %vm261, %v252
        %286 = vst.msk [vmem:[#allocation2 + $0xc0] sm:$0xff] %vm261, %v253
        %287 = vst.msk [vmem:[#allocation2 + $0xc8] sm:$0xff] %vm261, %v254
        %288 = vst.msk [vmem:[#allocation2 + $0xd0] sm:$0xff] %vm261, %v255
        %289 = vst.msk [vmem:[#allocation2 + $0xd8] sm:$0xff] %vm261, %v256
        %290 = vst.msk [vmem:[#allocation2 + $0xe0] sm:$0xff] %vm261, %v257
        %291 = vst.msk [vmem:[#allocation2 + $0xe8] sm:$0xff] %vm261, %v258
        %292 = vst.msk [vmem:[#allocation2 + $0xf0] sm:$0xff] %vm261, %v259
        %293 = vst.msk [vmem:[#allocation2 + $0xf8] sm:$0xff] %vm261, %v260
        %v294 = vld [vmem:[%s195 + $0x1] sm:$0xff]
        %v295 = vld [vmem:[%s195 + $0x9] sm:$0xff]
        %v296 = vld [vmem:[%s195 + $0x19] sm:$0xff]
        %v297 = vld [vmem:[%s195 + $0x21] sm:$0xff]
        %v298 = vld [vmem:[%s195 + $0x31] sm:$0xff]
        %v299 = vld [vmem:[%s195 + $0x39] sm:$0xff]
        %v300 = vld [vmem:[%s195 + $0x49] sm:$0xff]
        %v301 = vld [vmem:[%s195 + $0x51] sm:$0xff]
        %v302 = vld [vmem:[%s195 + $0x61] sm:$0xff]
        %v303 = vld [vmem:[%s195 + $0x69] sm:$0xff]
        %v304 = vld [vmem:[%s195 + $0x79] sm:$0xff]
        %v305 = vld [vmem:[%s195 + $0x81] sm:$0xff]
        %v306 = vld [vmem:[%s195 + $0x91] sm:$0xff]
        %v307 = vld [vmem:[%s195 + $0x99] sm:$0xff]
        %v308 = vld [vmem:[%s195 + $0xa9] sm:$0xff]
        %v309 = vld [vmem:[%s195 + $0xb1] sm:$0xff]
        %v310 = vld [vmem:[%s195 + $0xc1] sm:$0xff]
        %v311 = vld [vmem:[%s195 + $0xc9] sm:$0xff]
        %v312 = vld [vmem:[%s195 + $0xd9] sm:$0xff]
        %v313 = vld [vmem:[%s195 + $0xe1] sm:$0xff]
        %v314 = vld [vmem:[%s195 + $0xf1] sm:$0xff]
        %v315 = vld [vmem:[%s195 + $0xf9] sm:$0xff]
        %v316 = vld [vmem:[%s195 + $0x109] sm:$0xff]
        %v317 = vld [vmem:[%s195 + $0x111] sm:$0xff]
        %v318 = vld [vmem:[%s195 + $0x121] sm:$0xff]
        %v319 = vld [vmem:[%s195 + $0x129] sm:$0xff]
        %v320 = vld [vmem:[%s195 + $0x139] sm:$0xff]
        %v321 = vld [vmem:[%s195 + $0x141] sm:$0xff]
        %v322 = vld [vmem:[%s195 + $0x151] sm:$0xff]
        %v323 = vld [vmem:[%s195 + $0x159] sm:$0xff]
        %v324 = vld [vmem:[%s195 + $0x169] sm:$0xff]
        %v325 = vld [vmem:[%s195 + $0x171] sm:$0xff]
        %358 = vrot.lane.b32.xlu0 %v294, 4
        %v359 = vpop.permute.xlu0 %358
        %360 = vrot.lane.b32.xlu0 %v295, 4
        %v361 = vpop.permute.xlu0 %360
        %362 = vrot.lane.b32.xlu0 %v296, 4
        %v363 = vpop.permute.xlu0 %362
        %364 = vrot.lane.b32.xlu0 %v297, 4
        %v365 = vpop.permute.xlu0 %364
        %366 = vrot.lane.b32.xlu0 %v298, 4
        %v367 = vpop.permute.xlu0 %366
        %368 = vrot.lane.b32.xlu0 %v299, 4
        %v369 = vpop.permute.xlu0 %368
        %370 = vrot.lane.b32.xlu0 %v300, 4
        %v371 = vpop.permute.xlu0 %370
        %372 = vrot.lane.b32.xlu0 %v301, 4
        %v373 = vpop.permute.xlu0 %372
        %374 = vrot.lane.b32.xlu0 %v302, 4
        %v375 = vpop.permute.xlu0 %374
        %376 = vrot.lane.b32.xlu0 %v303, 4
        %v377 = vpop.permute.xlu0 %376
        %378 = vrot.lane.b32.xlu0 %v304, 4
        %v379 = vpop.permute.xlu0 %378
        %380 = vrot.lane.b32.xlu0 %v305, 4
        %v381 = vpop.permute.xlu0 %380
        %382 = vrot.lane.b32.xlu0 %v306, 4
        %v383 = vpop.permute.xlu0 %382
        %384 = vrot.lane.b32.xlu0 %v307, 4
        %v385 = vpop.permute.xlu0 %384
        %386 = vrot.lane.b32.xlu0 %v308, 4
        %v387 = vpop.permute.xlu0 %386
        %388 = vrot.lane.b32.xlu0 %v309, 4
        %v389 = vpop.permute.xlu0 %388
        %390 = vrot.lane.b32.xlu0 %v310, 4
        %v391 = vpop.permute.xlu0 %390
        %392 = vrot.lane.b32.xlu0 %v311, 4
        %v393 = vpop.permute.xlu0 %392
        %394 = vrot.lane.b32.xlu0 %v312, 4
        %v395 = vpop.permute.xlu0 %394
        %396 = vrot.lane.b32.xlu0 %v313, 4
        %v397 = vpop.permute.xlu0 %396
        %398 = vrot.lane.b32.xlu0 %v314, 4
        %v399 = vpop.permute.xlu0 %398
        %400 = vrot.lane.b32.xlu0 %v315, 4
        %v401 = vpop.permute.xlu0 %400
        %402 = vrot.lane.b32.xlu0 %v316, 4
        %v403 = vpop.permute.xlu0 %402
        %404 = vrot.lane.b32.xlu0 %v317, 4
        %v405 = vpop.permute.xlu0 %404
        %406 = vrot.lane.b32.xlu0 %v318, 4
        %v407 = vpop.permute.xlu0 %406
        %408 = vrot.lane.b32.xlu0 %v319, 4
        %v409 = vpop.permute.xlu0 %408
        %410 = vrot.lane.b32.xlu0 %v320, 4
        %v411 = vpop.permute.xlu0 %410
        %412 = vrot.lane.b32.xlu0 %v321, 4
        %v413 = vpop.permute.xlu0 %412
        %414 = vrot.lane.b32.xlu0 %v322, 4
        %v415 = vpop.permute.xlu0 %414
        %416 = vrot.lane.b32.xlu0 %v323, 4
        %v417 = vpop.permute.xlu0 %416
        %418 = vrot.lane.b32.xlu0 %v324, 4
        %v419 = vpop.permute.xlu0 %418
        %420 = vrot.lane.b32.xlu0 %v325, 4
        %v421 = vpop.permute.xlu0 %420
        %vm454 = vcmask 64544
        %455 = vst.msk [vmem:[#allocation2] sm:$0xff] %vm454, %v359
        %456 = vst.msk [vmem:[#allocation2 + $0x8] sm:$0xff] %vm454, %v361
        %457 = vst.msk [vmem:[#allocation2 + $0x10] sm:$0xff] %vm454, %v363
        %458 = vst.msk [vmem:[#allocation2 + $0x18] sm:$0xff] %vm454, %v365
        %459 = vst.msk [vmem:[#allocation2 + $0x20] sm:$0xff] %vm454, %v367
        %460 = vst.msk [vmem:[#allocation2 + $0x28] sm:$0xff] %vm454, %v369
        %461 = vst.msk [vmem:[#allocation2 + $0x30] sm:$0xff] %vm454, %v371
        %462 = vst.msk [vmem:[#allocation2 + $0x38] sm:$0xff] %vm454, %v373
        %463 = vst.msk [vmem:[#allocation2 + $0x40] sm:$0xff] %vm454, %v375
        %464 = vst.msk [vmem:[#allocation2 + $0x48] sm:$0xff] %vm454, %v377
        %465 = vst.msk [vmem:[#allocation2 + $0x50] sm:$0xff] %vm454, %v379
        %466 = vst.msk [vmem:[#allocation2 + $0x58] sm:$0xff] %vm454, %v381
        %467 = vst.msk [vmem:[#allocation2 + $0x60] sm:$0xff] %vm454, %v383
        %468 = vst.msk [vmem:[#allocation2 + $0x68] sm:$0xff] %vm454, %v385
        %469 = vst.msk [vmem:[#allocation2 + $0x70] sm:$0xff] %vm454, %v387
        %470 = vst.msk [vmem:[#allocation2 + $0x78] sm:$0xff] %vm454, %v389
        %471 = vst.msk [vmem:[#allocation2 + $0x80] sm:$0xff] %vm454, %v391
        %472 = vst.msk [vmem:[#allocation2 + $0x88] sm:$0xff] %vm454, %v393
        %473 = vst.msk [vmem:[#allocation2 + $0x90] sm:$0xff] %vm454, %v395
        %474 = vst.msk [vmem:[#allocation2 + $0x98] sm:$0xff] %vm454, %v397
        %475 = vst.msk [vmem:[#allocation2 + $0xa0] sm:$0xff] %vm454, %v399
        %476 = vst.msk [vmem:[#allocation2 + $0xa8] sm:$0xff] %vm454, %v401
        %477 = vst.msk [vmem:[#allocation2 + $0xb0] sm:$0xff] %vm454, %v403
        %478 = vst.msk [vmem:[#allocation2 + $0xb8] sm:$0xff] %vm454, %v405
        %479 = vst.msk [vmem:[#allocation2 + $0xc0] sm:$0xff] %vm454, %v407
        %480 = vst.msk [vmem:[#allocation2 + $0xc8] sm:$0xff] %vm454, %v409
        %481 = vst.msk [vmem:[#allocation2 + $0xd0] sm:$0xff] %vm454, %v411
        %482 = vst.msk [vmem:[#allocation2 + $0xd8] sm:$0xff] %vm454, %v413
        %483 = vst.msk [vmem:[#allocation2 + $0xe0] sm:$0xff] %vm454, %v415
        %484 = vst.msk [vmem:[#allocation2 + $0xe8] sm:$0xff] %vm454, %v417
        %485 = vst.msk [vmem:[#allocation2 + $0xf0] sm:$0xff] %vm454, %v419
        %486 = vst.msk [vmem:[#allocation2 + $0xf8] sm:$0xff] %vm454, %v421
        %v487 = vld [vmem:[%s195 + $0x2] sm:$0xff]
        %v488 = vld [vmem:[%s195 + $0xa] sm:$0xff]
        %v489 = vld [vmem:[%s195 + $0x1a] sm:$0xff]
        %v490 = vld [vmem:[%s195 + $0x22] sm:$0xff]
        %v491 = vld [vmem:[%s195 + $0x32] sm:$0xff]
        %v492 = vld [vmem:[%s195 + $0x3a] sm:$0xff]
        %v493 = vld [vmem:[%s195 + $0x4a] sm:$0xff]
        %v494 = vld [vmem:[%s195 + $0x52] sm:$0xff]
        %v495 = vld [vmem:[%s195 + $0x62] sm:$0xff]
        %v496 = vld [vmem:[%s195 + $0x6a] sm:$0xff]
        %v497 = vld [vmem:[%s195 + $0x7a] sm:$0xff]
        %v498 = vld [vmem:[%s195 + $0x82] sm:$0xff]
        %v499 = vld [vmem:[%s195 + $0x92] sm:$0xff]
        %v500 = vld [vmem:[%s195 + $0x9a] sm:$0xff]
        %v501 = vld [vmem:[%s195 + $0xaa] sm:$0xff]
        %v502 = vld [vmem:[%s195 + $0xb2] sm:$0xff]
        %v503 = vld [vmem:[%s195 + $0xc2] sm:$0xff]
        %v504 = vld [vmem:[%s195 + $0xca] sm:$0xff]
        %v505 = vld [vmem:[%s195 + $0xda] sm:$0xff]
        %v506 = vld [vmem:[%s195 + $0xe2] sm:$0xff]
        %v507 = vld [vmem:[%s195 + $0xf2] sm:$0xff]
        %v508 = vld [vmem:[%s195 + $0xfa] sm:$0xff]
        %v509 = vld [vmem:[%s195 + $0x10a] sm:$0xff]
        %v510 = vld [vmem:[%s195 + $0x112] sm:$0xff]
        %v511 = vld [vmem:[%s195 + $0x122] sm:$0xff]
        %v512 = vld [vmem:[%s195 + $0x12a] sm:$0xff]
        %v513 = vld [vmem:[%s195 + $0x13a] sm:$0xff]
        %v514 = vld [vmem:[%s195 + $0x142] sm:$0xff]
        %v515 = vld [vmem:[%s195 + $0x152] sm:$0xff]
        %v516 = vld [vmem:[%s195 + $0x15a] sm:$0xff]
        %v517 = vld [vmem:[%s195 + $0x16a] sm:$0xff]
        %v518 = vld [vmem:[%s195 + $0x172] sm:$0xff]
        %551 = vrot.lane.b32.xlu0 %v487, 8
        %v552 = vpop.permute.xlu0 %551
        %553 = vrot.lane.b32.xlu0 %v488, 8
        %v554 = vpop.permute.xlu0 %553
        %555 = vrot.lane.b32.xlu0 %v489, 8
        %v556 = vpop.permute.xlu0 %555
        %557 = vrot.lane.b32.xlu0 %v490, 8
        %v558 = vpop.permute.xlu0 %557
        %559 = vrot.lane.b32.xlu0 %v491, 8
        %v560 = vpop.permute.xlu0 %559
        %561 = vrot.lane.b32.xlu0 %v492, 8
        %v562 = vpop.permute.xlu0 %561
        %563 = vrot.lane.b32.xlu0 %v493, 8
        %v564 = vpop.permute.xlu0 %563
        %565 = vrot.lane.b32.xlu0 %v494, 8
        %v566 = vpop.permute.xlu0 %565
        %567 = vrot.lane.b32.xlu0 %v495, 8
        %v568 = vpop.permute.xlu0 %567
        %569 = vrot.lane.b32.xlu0 %v496, 8
        %v570 = vpop.permute.xlu0 %569
        %571 = vrot.lane.b32.xlu0 %v497, 8
        %v572 = vpop.permute.xlu0 %571
        %573 = vrot.lane.b32.xlu0 %v498, 8
        %v574 = vpop.permute.xlu0 %573
        %575 = vrot.lane.b32.xlu0 %v499, 8
        %v576 = vpop.permute.xlu0 %575
        %577 = vrot.lane.b32.xlu0 %v500, 8
        %v578 = vpop.permute.xlu0 %577
        %579 = vrot.lane.b32.xlu0 %v501, 8
        %v580 = vpop.permute.xlu0 %579
        %581 = vrot.lane.b32.xlu0 %v502, 8
        %v582 = vpop.permute.xlu0 %581
        %583 = vrot.lane.b32.xlu0 %v503, 8
        %v584 = vpop.permute.xlu0 %583
        %585 = vrot.lane.b32.xlu0 %v504, 8
        %v586 = vpop.permute.xlu0 %585
        %587 = vrot.lane.b32.xlu0 %v505, 8
        %v588 = vpop.permute.xlu0 %587
        %589 = vrot.lane.b32.xlu0 %v506, 8
        %v590 = vpop.permute.xlu0 %589
        %591 = vrot.lane.b32.xlu0 %v507, 8
        %v592 = vpop.permute.xlu0 %591
        %593 = vrot.lane.b32.xlu0 %v508, 8
        %v594 = vpop.permute.xlu0 %593
        %595 = vrot.lane.b32.xlu0 %v509, 8
        %v596 = vpop.permute.xlu0 %595
        %597 = vrot.lane.b32.xlu0 %v510, 8
        %v598 = vpop.permute.xlu0 %597
        %599 = vrot.lane.b32.xlu0 %v511, 8
        %v600 = vpop.permute.xlu0 %599
        %601 = vrot.lane.b32.xlu0 %v512, 8
        %v602 = vpop.permute.xlu0 %601
        %603 = vrot.lane.b32.xlu0 %v513, 8
        %v604 = vpop.permute.xlu0 %603
        %605 = vrot.lane.b32.xlu0 %v514, 8
        %v606 = vpop.permute.xlu0 %605
        %607 = vrot.lane.b32.xlu0 %v515, 8
        %v608 = vpop.permute.xlu0 %607
        %609 = vrot.lane.b32.xlu0 %v516, 8
        %v610 = vpop.permute.xlu0 %609
        %611 = vrot.lane.b32.xlu0 %v517, 8
        %v612 = vpop.permute.xlu0 %611
        %613 = vrot.lane.b32.xlu0 %v518, 8
        %v614 = vpop.permute.xlu0 %613
        %vm647 = vcmask 97344
        %648 = vst.msk [vmem:[#allocation2] sm:$0xff] %vm647, %v552
        %649 = vst.msk [vmem:[#allocation2 + $0x8] sm:$0xff] %vm647, %v554
        %650 = vst.msk [vmem:[#allocation2 + $0x10] sm:$0xff] %vm647, %v556
        %651 = vst.msk [vmem:[#allocation2 + $0x18] sm:$0xff] %vm647, %v558
        %652 = vst.msk [vmem:[#allocation2 + $0x20] sm:$0xff] %vm647, %v560
        %653 = vst.msk [vmem:[#allocation2 + $0x28] sm:$0xff] %vm647, %v562
        %654 = vst.msk [vmem:[#allocation2 + $0x30] sm:$0xff] %vm647, %v564
        %655 = vst.msk [vmem:[#allocation2 + $0x38] sm:$0xff] %vm647, %v566
        %656 = vst.msk [vmem:[#allocation2 + $0x40] sm:$0xff] %vm647, %v568
        %657 = vst.msk [vmem:[#allocation2 + $0x48] sm:$0xff] %vm647, %v570
        %658 = vst.msk [vmem:[#allocation2 + $0x50] sm:$0xff] %vm647, %v572
        %659 = vst.msk [vmem:[#allocation2 + $0x58] sm:$0xff] %vm647, %v574
        %660 = vst.msk [vmem:[#allocation2 + $0x60] sm:$0xff] %vm647, %v576
        %661 = vst.msk [vmem:[#allocation2 + $0x68] sm:$0xff] %vm647, %v578
        %662 = vst.msk [vmem:[#allocation2 + $0x70] sm:$0xff] %vm647, %v580
        %663 = vst.msk [vmem:[#allocation2 + $0x78] sm:$0xff] %vm647, %v582
        %664 = vst.msk [vmem:[#allocation2 + $0x80] sm:$0xff] %vm647, %v584
        %665 = vst.msk [vmem:[#allocation2 + $0x88] sm:$0xff] %vm647, %v586
        %666 = vst.msk [vmem:[#allocation2 + $0x90] sm:$0xff] %vm647, %v588
        %667 = vst.msk [vmem:[#allocation2 + $0x98] sm:$0xff] %vm647, %v590
        %668 = vst.msk [vmem:[#allocation2 + $0xa0] sm:$0xff] %vm647, %v592
        %669 = vst.msk [vmem:[#allocation2 + $0xa8] sm:$0xff] %vm647, %v594
        %670 = vst.msk [vmem:[#allocation2 + $0xb0] sm:$0xff] %vm647, %v596
        %671 = vst.msk [vmem:[#allocation2 + $0xb8] sm:$0xff] %vm647, %v598
        %672 = vst.msk [vmem:[#allocation2 + $0xc0] sm:$0xff] %vm647, %v600
        %673 = vst.msk [vmem:[#allocation2 + $0xc8] sm:$0xff] %vm647, %v602
        %674 = vst.msk [vmem:[#allocation2 + $0xd0] sm:$0xff] %vm647, %v604
        %675 = vst.msk [vmem:[#allocation2 + $0xd8] sm:$0xff] %vm647, %v606
        %676 = vst.msk [vmem:[#allocation2 + $0xe0] sm:$0xff] %vm647, %v608
        %677 = vst.msk [vmem:[#allocation2 + $0xe8] sm:$0xff] %vm647, %v610
        %678 = vst.msk [vmem:[#allocation2 + $0xf0] sm:$0xff] %vm647, %v612
        %679 = vst.msk [vmem:[#allocation2 + $0xf8] sm:$0xff] %vm647, %v614
        %s680 = scalar_lea.vmem %s195, 24
        %v681 = vld [vmem:[%s680] sm:$0xff]
        %v682 = vld [vmem:[%s680 + $0x8] sm:$0xff]
        %v683 = vld [vmem:[%s680 + $0x18] sm:$0xff]
        %v684 = vld [vmem:[%s680 + $0x20] sm:$0xff]
        %v685 = vld [vmem:[%s680 + $0x30] sm:$0xff]
        %v686 = vld [vmem:[%s680 + $0x38] sm:$0xff]
        %v687 = vld [vmem:[%s680 + $0x48] sm:$0xff]
        %v688 = vld [vmem:[%s680 + $0x50] sm:$0xff]
        %v689 = vld [vmem:[%s680 + $0x60] sm:$0xff]
        %v690 = vld [vmem:[%s680 + $0x68] sm:$0xff]
        %v691 = vld [vmem:[%s680 + $0x78] sm:$0xff]
        %v692 = vld [vmem:[%s680 + $0x80] sm:$0xff]
        %v693 = vld [vmem:[%s680 + $0x90] sm:$0xff]
        %v694 = vld [vmem:[%s680 + $0x98] sm:$0xff]
        %v695 = vld [vmem:[%s680 + $0xa8] sm:$0xff]
        %v696 = vld [vmem:[%s680 + $0xb0] sm:$0xff]
        %v697 = vld [vmem:[%s680 + $0xc0] sm:$0xff]
        %v698 = vld [vmem:[%s680 + $0xc8] sm:$0xff]
        %v699 = vld [vmem:[%s680 + $0xd8] sm:$0xff]
        %v700 = vld [vmem:[%s680 + $0xe0] sm:$0xff]
        %v701 = vld [vmem:[%s680 + $0xf0] sm:$0xff]
        %v702 = vld [vmem:[%s680 + $0xf8] sm:$0xff]
        %v703 = vld [vmem:[%s680 + $0x108] sm:$0xff]
        %v704 = vld [vmem:[%s680 + $0x110] sm:$0xff]
        %v705 = vld [vmem:[%s680 + $0x120] sm:$0xff]
        %v706 = vld [vmem:[%s680 + $0x128] sm:$0xff]
        %v707 = vld [vmem:[%s680 + $0x138] sm:$0xff]
        %v708 = vld [vmem:[%s680 + $0x140] sm:$0xff]
        %v709 = vld [vmem:[%s680 + $0x150] sm:$0xff]
        %v710 = vld [vmem:[%s680 + $0x158] sm:$0xff]
        %v711 = vld [vmem:[%s680 + $0x168] sm:$0xff]
        %v712 = vld [vmem:[%s680 + $0x170] sm:$0xff]
        %745 = vrot.lane.b32.xlu0 %v681, 12
        %v746 = vpop.permute.xlu0 %745
        %747 = vrot.lane.b32.xlu0 %v682, 12
        %v748 = vpop.permute.xlu0 %747
        %749 = vrot.lane.b32.xlu0 %v683, 12
        %v750 = vpop.permute.xlu0 %749
        %751 = vrot.lane.b32.xlu0 %v684, 12
        %v752 = vpop.permute.xlu0 %751
        %753 = vrot.lane.b32.xlu0 %v685, 12
        %v754 = vpop.permute.xlu0 %753
        %755 = vrot.lane.b32.xlu0 %v686, 12
        %v756 = vpop.permute.xlu0 %755
        %757 = vrot.lane.b32.xlu0 %v687, 12
        %v758 = vpop.permute.xlu0 %757
        %759 = vrot.lane.b32.xlu0 %v688, 12
        %v760 = vpop.permute.xlu0 %759
        %761 = vrot.lane.b32.xlu0 %v689, 12
        %v762 = vpop.permute.xlu0 %761
        %763 = vrot.lane.b32.xlu0 %v690, 12
        %v764 = vpop.permute.xlu0 %763
        %765 = vrot.lane.b32.xlu0 %v691, 12
        %v766 = vpop.permute.xlu0 %765
        %767 = vrot.lane.b32.xlu0 %v692, 12
        %v768 = vpop.permute.xlu0 %767
        %769 = vrot.lane.b32.xlu0 %v693, 12
        %v770 = vpop.permute.xlu0 %769
        %771 = vrot.lane.b32.xlu0 %v694, 12
        %v772 = vpop.permute.xlu0 %771
        %773 = vrot.lane.b32.xlu0 %v695, 12
        %v774 = vpop.permute.xlu0 %773
        %775 = vrot.lane.b32.xlu0 %v696, 12
        %v776 = vpop.permute.xlu0 %775
        %777 = vrot.lane.b32.xlu0 %v697, 12
        %v778 = vpop.permute.xlu0 %777
        %779 = vrot.lane.b32.xlu0 %v698, 12
        %v780 = vpop.permute.xlu0 %779
        %781 = vrot.lane.b32.xlu0 %v699, 12
        %v782 = vpop.permute.xlu0 %781
        %783 = vrot.lane.b32.xlu0 %v700, 12
        %v784 = vpop.permute.xlu0 %783
        %785 = vrot.lane.b32.xlu0 %v701, 12
        %v786 = vpop.permute.xlu0 %785
        %787 = vrot.lane.b32.xlu0 %v702, 12
        %v788 = vpop.permute.xlu0 %787
        %789 = vrot.lane.b32.xlu0 %v703, 12
        %v790 = vpop.permute.xlu0 %789
        %791 = vrot.lane.b32.xlu0 %v704, 12
        %v792 = vpop.permute.xlu0 %791
        %793 = vrot.lane.b32.xlu0 %v705, 12
        %v794 = vpop.permute.xlu0 %793
        %795 = vrot.lane.b32.xlu0 %v706, 12
        %v796 = vpop.permute.xlu0 %795
        %797 = vrot.lane.b32.xlu0 %v707, 12
        %v798 = vpop.permute.xlu0 %797
        %799 = vrot.lane.b32.xlu0 %v708, 12
        %v800 = vpop.permute.xlu0 %799
        %801 = vrot.lane.b32.xlu0 %v709, 12
        %v802 = vpop.permute.xlu0 %801
        %803 = vrot.lane.b32.xlu0 %v710, 12
        %v804 = vpop.permute.xlu0 %803
        %805 = vrot.lane.b32.xlu0 %v711, 12
        %v806 = vpop.permute.xlu0 %805
        %807 = vrot.lane.b32.xlu0 %v712, 12
        %v808 = vpop.permute.xlu0 %807
        %vm841 = vcmask 130144
        %842 = vst.msk [vmem:[#allocation2] sm:$0xff] %vm841, %v746
        %843 = vst.msk [vmem:[#allocation2 + $0x8] sm:$0xff] %vm841, %v748
        %844 = vst.msk [vmem:[#allocation2 + $0x10] sm:$0xff] %vm841, %v750
        %845 = vst.msk [vmem:[#allocation2 + $0x18] sm:$0xff] %vm841, %v752
        %846 = vst.msk [vmem:[#allocation2 + $0x20] sm:$0xff] %vm841, %v754
        %847 = vst.msk [vmem:[#allocation2 + $0x28] sm:$0xff] %vm841, %v756
        %848 = vst.msk [vmem:[#allocation2 + $0x30] sm:$0xff] %vm841, %v758
        %849 = vst.msk [vmem:[#allocation2 + $0x38] sm:$0xff] %vm841, %v760
        %850 = vst.msk [vmem:[#allocation2 + $0x40] sm:$0xff] %vm841, %v762
        %851 = vst.msk [vmem:[#allocation2 + $0x48] sm:$0xff] %vm841, %v764
        %852 = vst.msk [vmem:[#allocation2 + $0x50] sm:$0xff] %vm841, %v766
        %853 = vst.msk [vmem:[#allocation2 + $0x58] sm:$0xff] %vm841, %v768
        %854 = vst.msk [vmem:[#allocation2 + $0x60] sm:$0xff] %vm841, %v770
        %855 = vst.msk [vmem:[#allocation2 + $0x68] sm:$0xff] %vm841, %v772
        %856 = vst.msk [vmem:[#allocation2 + $0x70] sm:$0xff] %vm841, %v774
        %857 = vst.msk [vmem:[#allocation2 + $0x78] sm:$0xff] %vm841, %v776
        %858 = vst.msk [vmem:[#allocation2 + $0x80] sm:$0xff] %vm841, %v778
        %859 = vst.msk [vmem:[#allocation2 + $0x88] sm:$0xff] %vm841, %v780
        %860 = vst.msk [vmem:[#allocation2 + $0x90] sm:$0xff] %vm841, %v782
        %861 = vst.msk [vmem:[#allocation2 + $0x98] sm:$0xff] %vm841, %v784
        %862 = vst.msk [vmem:[#allocation2 + $0xa0] sm:$0xff] %vm841, %v786
        %863 = vst.msk [vmem:[#allocation2 + $0xa8] sm:$0xff] %vm841, %v788
        %864 = vst.msk [vmem:[#allocation2 + $0xb0] sm:$0xff] %vm841, %v790
        %865 = vst.msk [vmem:[#allocation2 + $0xb8] sm:$0xff] %vm841, %v792
        %866 = vst.msk [vmem:[#allocation2 + $0xc0] sm:$0xff] %vm841, %v794
        %867 = vst.msk [vmem:[#allocation2 + $0xc8] sm:$0xff] %vm841, %v796
        %868 = vst.msk [vmem:[#allocation2 + $0xd0] sm:$0xff] %vm841, %v798
        %869 = vst.msk [vmem:[#allocation2 + $0xd8] sm:$0xff] %vm841, %v800
        %870 = vst.msk [vmem:[#allocation2 + $0xe0] sm:$0xff] %vm841, %v802
        %871 = vst.msk [vmem:[#allocation2 + $0xe8] sm:$0xff] %vm841, %v804
        %872 = vst.msk [vmem:[#allocation2 + $0xf0] sm:$0xff] %vm841, %v806
        %873 = vst.msk [vmem:[#allocation2 + $0xf8] sm:$0xff] %vm841, %v808
        %v874 = vld [vmem:[%s680 + $0x1] sm:$0xff]
        %v875 = vld [vmem:[%s680 + $0x9] sm:$0xff]
        %v876 = vld [vmem:[%s680 + $0x19] sm:$0xff]
        %v877 = vld [vmem:[%s680 + $0x21] sm:$0xff]
        %v878 = vld [vmem:[%s680 + $0x31] sm:$0xff]
        %v879 = vld [vmem:[%s680 + $0x39] sm:$0xff]
        %v880 = vld [vmem:[%s680 + $0x49] sm:$0xff]
        %v881 = vld [vmem:[%s680 + $0x51] sm:$0xff]
        %v882 = vld [vmem:[%s680 + $0x61] sm:$0xff]
        %v883 = vld [vmem:[%s680 + $0x69] sm:$0xff]
        %v884 = vld [vmem:[%s680 + $0x79] sm:$0xff]
        %v885 = vld [vmem:[%s680 + $0x81] sm:$0xff]
        %v886 = vld [vmem:[%s680 + $0x91] sm:$0xff]
        %v887 = vld [vmem:[%s680 + $0x99] sm:$0xff]
        %v888 = vld [vmem:[%s680 + $0xa9] sm:$0xff]
        %v889 = vld [vmem:[%s680 + $0xb1] sm:$0xff]
        %v890 = vld [vmem:[%s680 + $0xc1] sm:$0xff]
        %v891 = vld [vmem:[%s680 + $0xc9] sm:$0xff]
        %v892 = vld [vmem:[%s680 + $0xd9] sm:$0xff]
        %v893 = vld [vmem:[%s680 + $0xe1] sm:$0xff]
        %v894 = vld [vmem:[%s680 + $0xf1] sm:$0xff]
        %v895 = vld [vmem:[%s680 + $0xf9] sm:$0xff]
        %v896 = vld [vmem:[%s680 + $0x109] sm:$0xff]
        %v897 = vld [vmem:[%s680 + $0x111] sm:$0xff]
        %v898 = vld [vmem:[%s680 + $0x121] sm:$0xff]
        %v899 = vld [vmem:[%s680 + $0x129] sm:$0xff]
        %v900 = vld [vmem:[%s680 + $0x139] sm:$0xff]
        %v901 = vld [vmem:[%s680 + $0x141] sm:$0xff]
        %v902 = vld [vmem:[%s680 + $0x151] sm:$0xff]
        %v903 = vld [vmem:[%s680 + $0x159] sm:$0xff]
        %v904 = vld [vmem:[%s680 + $0x169] sm:$0xff]
        %v905 = vld [vmem:[%s680 + $0x171] sm:$0xff]
        %938 = vrot.lane.b32.xlu0 %v874, 16
        %v939 = vpop.permute.xlu0 %938
        %940 = vrot.lane.b32.xlu0 %v875, 16
        %v941 = vpop.permute.xlu0 %940
        %942 = vrot.lane.b32.xlu0 %v876, 16
        %v943 = vpop.permute.xlu0 %942
        %944 = vrot.lane.b32.xlu0 %v877, 16
        %v945 = vpop.permute.xlu0 %944
        %946 = vrot.lane.b32.xlu0 %v878, 16
        %v947 = vpop.permute.xlu0 %946
        %948 = vrot.lane.b32.xlu0 %v879, 16
        %v949 = vpop.permute.xlu0 %948
        %950 = vrot.lane.b32.xlu0 %v880, 16
        %v951 = vpop.permute.xlu0 %950
        %952 = vrot.lane.b32.xlu0 %v881, 16
        %v953 = vpop.permute.xlu0 %952
        %954 = vrot.lane.b32.xlu0 %v882, 16
        %v955 = vpop.permute.xlu0 %954
        %956 = vrot.lane.b32.xlu0 %v883, 16
        %v957 = vpop.permute.xlu0 %956
        %958 = vrot.lane.b32.xlu0 %v884, 16
        %v959 = vpop.permute.xlu0 %958
        %960 = vrot.lane.b32.xlu0 %v885, 16
        %v961 = vpop.permute.xlu0 %960
        %962 = vrot.lane.b32.xlu0 %v886, 16
        %v963 = vpop.permute.xlu0 %962
        %964 = vrot.lane.b32.xlu0 %v887, 16
        %v965 = vpop.permute.xlu0 %964
        %966 = vrot.lane.b32.xlu0 %v888, 16
        %v967 = vpop.permute.xlu0 %966
        %968 = vrot.lane.b32.xlu0 %v889, 16
        %v969 = vpop.permute.xlu0 %968
        %970 = vrot.lane.b32.xlu0 %v890, 16
        %v971 = vpop.permute.xlu0 %970
        %972 = vrot.lane.b32.xlu0 %v891, 16
        %v973 = vpop.permute.xlu0 %972
        %974 = vrot.lane.b32.xlu0 %v892, 16
        %v975 = vpop.permute.xlu0 %974
        %976 = vrot.lane.b32.xlu0 %v893, 16
        %v977 = vpop.permute.xlu0 %976
        %978 = vrot.lane.b32.xlu0 %v894, 16
        %v979 = vpop.permute.xlu0 %978
        %980 = vrot.lane.b32.xlu0 %v895, 16
        %v981 = vpop.permute.xlu0 %980
        %982 = vrot.lane.b32.xlu0 %v896, 16
        %v983 = vpop.permute.xlu0 %982
        %984 = vrot.lane.b32.xlu0 %v897, 16
        %v985 = vpop.permute.xlu0 %984
        %986 = vrot.lane.b32.xlu0 %v898, 16
        %v987 = vpop.permute.xlu0 %986
        %988 = vrot.lane.b32.xlu0 %v899, 16
        %v989 = vpop.permute.xlu0 %988
        %990 = vrot.lane.b32.xlu0 %v900, 16
        %v991 = vpop.permute.xlu0 %990
        %992 = vrot.lane.b32.xlu0 %v901, 16
        %v993 = vpop.permute.xlu0 %992
        %994 = vrot.lane.b32.xlu0 %v902, 16
        %v995 = vpop.permute.xlu0 %994
        %996 = vrot.lane.b32.xlu0 %v903, 16
        %v997 = vpop.permute.xlu0 %996
        %998 = vrot.lane.b32.xlu0 %v904, 16
        %v999 = vpop.permute.xlu0 %998
        %1000 = vrot.lane.b32.xlu0 %v905, 16
        %v1001 = vpop.permute.xlu0 %1000
        %vm1034 = vcmask 162944
        %1035 = vst.msk [vmem:[#allocation2] sm:$0xff] %vm1034, %v939
        %1036 = vst.msk [vmem:[#allocation2 + $0x8] sm:$0xff] %vm1034, %v941
        %1037 = vst.msk [vmem:[#allocation2 + $0x10] sm:$0xff] %vm1034, %v943
        %1038 = vst.msk [vmem:[#allocation2 + $0x18] sm:$0xff] %vm1034, %v945
        %1039 = vst.msk [vmem:[#allocation2 + $0x20] sm:$0xff] %vm1034, %v947
        %1040 = vst.msk [vmem:[#allocation2 + $0x28] sm:$0xff] %vm1034, %v949
        %1041 = vst.msk [vmem:[#allocation2 + $0x30] sm:$0xff] %vm1034, %v951
        %1042 = vst.msk [vmem:[#allocation2 + $0x38] sm:$0xff] %vm1034, %v953
        %1043 = vst.msk [vmem:[#allocation2 + $0x40] sm:$0xff] %vm1034, %v955
        %1044 = vst.msk [vmem:[#allocation2 + $0x48] sm:$0xff] %vm1034, %v957
        %1045 = vst.msk [vmem:[#allocation2 + $0x50] sm:$0xff] %vm1034, %v959
        %1046 = vst.msk [vmem:[#allocation2 + $0x58] sm:$0xff] %vm1034, %v961
        %1047 = vst.msk [vmem:[#allocation2 + $0x60] sm:$0xff] %vm1034, %v963
        %1048 = vst.msk [vmem:[#allocation2 + $0x68] sm:$0xff] %vm1034, %v965
        %1049 = vst.msk [vmem:[#allocation2 + $0x70] sm:$0xff] %vm1034, %v967
        %1050 = vst.msk [vmem:[#allocation2 + $0x78] sm:$0xff] %vm1034, %v969
        %1051 = vst.msk [vmem:[#allocation2 + $0x80] sm:$0xff] %vm1034, %v971
        %1052 = vst.msk [vmem:[#allocation2 + $0x88] sm:$0xff] %vm1034, %v973
        %1053 = vst.msk [vmem:[#allocation2 + $0x90] sm:$0xff] %vm1034, %v975
        %1054 = vst.msk [vmem:[#allocation2 + $0x98] sm:$0xff] %vm1034, %v977
        %1055 = vst.msk [vmem:[#allocation2 + $0xa0] sm:$0xff] %vm1034, %v979
        %1056 = vst.msk [vmem:[#allocation2 + $0xa8] sm:$0xff] %vm1034, %v981
        %1057 = vst.msk [vmem:[#allocation2 + $0xb0] sm:$0xff] %vm1034, %v983
        %1058 = vst.msk [vmem:[#allocation2 + $0xb8] sm:$0xff] %vm1034, %v985
        %1059 = vst.msk [vmem:[#allocation2 + $0xc0] sm:$0xff] %vm1034, %v987
        %1060 = vst.msk [vmem:[#allocation2 + $0xc8] sm:$0xff] %vm1034, %v989
        %1061 = vst.msk [vmem:[#allocation2 + $0xd0] sm:$0xff] %vm1034, %v991
        %1062 = vst.msk [vmem:[#allocation2 + $0xd8] sm:$0xff] %vm1034, %v993
        %1063 = vst.msk [vmem:[#allocation2 + $0xe0] sm:$0xff] %vm1034, %v995
        %1064 = vst.msk [vmem:[#allocation2 + $0xe8] sm:$0xff] %vm1034, %v997
        %1065 = vst.msk [vmem:[#allocation2 + $0xf0] sm:$0xff] %vm1034, %v999
        %1066 = vst.msk [vmem:[#allocation2 + $0xf8] sm:$0xff] %vm1034, %v1001
        %v1067 = vld [vmem:[%s680 + $0x2] sm:$0xff]
        %v1068 = vld [vmem:[%s680 + $0xa] sm:$0xff]
        %v1069 = vld [vmem:[%s680 + $0x1a] sm:$0xff]
        %v1070 = vld [vmem:[%s680 + $0x22] sm:$0xff]
        %v1071 = vld [vmem:[%s680 + $0x32] sm:$0xff]
        %v1072 = vld [vmem:[%s680 + $0x3a] sm:$0xff]
        %v1073 = vld [vmem:[%s680 + $0x4a] sm:$0xff]
        %v1074 = vld [vmem:[%s680 + $0x52] sm:$0xff]
        %v1075 = vld [vmem:[%s680 + $0x62] sm:$0xff]
        %v1076 = vld [vmem:[%s680 + $0x6a] sm:$0xff]
        %v1077 = vld [vmem:[%s680 + $0x7a] sm:$0xff]
        %v1078 = vld [vmem:[%s680 + $0x82] sm:$0xff]
        %v1079 = vld [vmem:[%s680 + $0x92] sm:$0xff]
        %v1080 = vld [vmem:[%s680 + $0x9a] sm:$0xff]
        %v1081 = vld [vmem:[%s680 + $0xaa] sm:$0xff]
        %v1082 = vld [vmem:[%s680 + $0xb2] sm:$0xff]
        %v1083 = vld [vmem:[%s680 + $0xc2] sm:$0xff]
        %v1084 = vld [vmem:[%s680 + $0xca] sm:$0xff]
        %v1085 = vld [vmem:[%s680 + $0xda] sm:$0xff]
        %v1086 = vld [vmem:[%s680 + $0xe2] sm:$0xff]
        %v1087 = vld [vmem:[%s680 + $0xf2] sm:$0xff]
        %v1088 = vld [vmem:[%s680 + $0xfa] sm:$0xff]
        %v1089 = vld [vmem:[%s680 + $0x10a] sm:$0xff]
        %v1090 = vld [vmem:[%s680 + $0x112] sm:$0xff]
        %v1091 = vld [vmem:[%s680 + $0x122] sm:$0xff]
        %v1092 = vld [vmem:[%s680 + $0x12a] sm:$0xff]
        %v1093 = vld [vmem:[%s680 + $0x13a] sm:$0xff]
        %v1094 = vld [vmem:[%s680 + $0x142] sm:$0xff]
        %v1095 = vld [vmem:[%s680 + $0x152] sm:$0xff]
        %v1096 = vld [vmem:[%s680 + $0x15a] sm:$0xff]
        %v1097 = vld [vmem:[%s680 + $0x16a] sm:$0xff]
        %v1098 = vld [vmem:[%s680 + $0x172] sm:$0xff]
        %1131 = vrot.lane.b32.xlu0 %v1067, 20
        %v1132 = vpop.permute.xlu0 %1131
        %1133 = vrot.lane.b32.xlu0 %v1068, 20
        %v1134 = vpop.permute.xlu0 %1133
        %1135 = vrot.lane.b32.xlu0 %v1069, 20
        %v1136 = vpop.permute.xlu0 %1135
        %1137 = vrot.lane.b32.xlu0 %v1070, 20
        %v1138 = vpop.permute.xlu0 %1137
        %1139 = vrot.lane.b32.xlu0 %v1071, 20
        %v1140 = vpop.permute.xlu0 %1139
        %1141 = vrot.lane.b32.xlu0 %v1072, 20
        %v1142 = vpop.permute.xlu0 %1141
        %1143 = vrot.lane.b32.xlu0 %v1073, 20
        %v1144 = vpop.permute.xlu0 %1143
        %1145 = vrot.lane.b32.xlu0 %v1074, 20
        %v1146 = vpop.permute.xlu0 %1145
        %1147 = vrot.lane.b32.xlu0 %v1075, 20
        %v1148 = vpop.permute.xlu0 %1147
        %1149 = vrot.lane.b32.xlu0 %v1076, 20
        %v1150 = vpop.permute.xlu0 %1149
        %1151 = vrot.lane.b32.xlu0 %v1077, 20
        %v1152 = vpop.permute.xlu0 %1151
        %1153 = vrot.lane.b32.xlu0 %v1078, 20
        %v1154 = vpop.permute.xlu0 %1153
        %1155 = vrot.lane.b32.xlu0 %v1079, 20
        %v1156 = vpop.permute.xlu0 %1155
        %1157 = vrot.lane.b32.xlu0 %v1080, 20
        %v1158 = vpop.permute.xlu0 %1157
        %1159 = vrot.lane.b32.xlu0 %v1081, 20
        %v1160 = vpop.permute.xlu0 %1159
        %1161 = vrot.lane.b32.xlu0 %v1082, 20
        %v1162 = vpop.permute.xlu0 %1161
        %1163 = vrot.lane.b32.xlu0 %v1083, 20
        %v1164 = vpop.permute.xlu0 %1163
        %1165 = vrot.lane.b32.xlu0 %v1084, 20
        %v1166 = vpop.permute.xlu0 %1165
        %1167 = vrot.lane.b32.xlu0 %v1085, 20
        %v1168 = vpop.permute.xlu0 %1167
        %1169 = vrot.lane.b32.xlu0 %v1086, 20
        %v1170 = vpop.permute.xlu0 %1169
        %1171 = vrot.lane.b32.xlu0 %v1087, 20
        %v1172 = vpop.permute.xlu0 %1171
        %1173 = vrot.lane.b32.xlu0 %v1088, 20
        %v1174 = vpop.permute.xlu0 %1173
        %1175 = vrot.lane.b32.xlu0 %v1089, 20
        %v1176 = vpop.permute.xlu0 %1175
        %1177 = vrot.lane.b32.xlu0 %v1090, 20
        %v1178 = vpop.permute.xlu0 %1177
        %1179 = vrot.lane.b32.xlu0 %v1091, 20
        %v1180 = vpop.permute.xlu0 %1179
        %1181 = vrot.lane.b32.xlu0 %v1092, 20
        %v1182 = vpop.permute.xlu0 %1181
        %1183 = vrot.lane.b32.xlu0 %v1093, 20
        %v1184 = vpop.permute.xlu0 %1183
        %1185 = vrot.lane.b32.xlu0 %v1094, 20
        %v1186 = vpop.permute.xlu0 %1185
        %1187 = vrot.lane.b32.xlu0 %v1095, 20
        %v1188 = vpop.permute.xlu0 %1187
        %1189 = vrot.lane.b32.xlu0 %v1096, 20
        %v1190 = vpop.permute.xlu0 %1189
        %1191 = vrot.lane.b32.xlu0 %v1097, 20
        %v1192 = vpop.permute.xlu0 %1191
        %1193 = vrot.lane.b32.xlu0 %v1098, 20
        %v1194 = vpop.permute.xlu0 %1193
        %vm1227 = vcmask 195744
        %1228 = vst.msk [vmem:[#allocation2] sm:$0xff] %vm1227, %v1132
        %1229 = vst.msk [vmem:[#allocation2 + $0x8] sm:$0xff] %vm1227, %v1134
        %1230 = vst.msk [vmem:[#allocation2 + $0x10] sm:$0xff] %vm1227, %v1136
        %1231 = vst.msk [vmem:[#allocation2 + $0x18] sm:$0xff] %vm1227, %v1138
        %1232 = vst.msk [vmem:[#allocation2 + $0x20] sm:$0xff] %vm1227, %v1140
        %1233 = vst.msk [vmem:[#allocation2 + $0x28] sm:$0xff] %vm1227, %v1142
        %1234 = vst.msk [vmem:[#allocation2 + $0x30] sm:$0xff] %vm1227, %v1144
        %1235 = vst.msk [vmem:[#allocation2 + $0x38] sm:$0xff] %vm1227, %v1146
        %1236 = vst.msk [vmem:[#allocation2 + $0x40] sm:$0xff] %vm1227, %v1148
        %1237 = vst.msk [vmem:[#allocation2 + $0x48] sm:$0xff] %vm1227, %v1150
        %1238 = vst.msk [vmem:[#allocation2 + $0x50] sm:$0xff] %vm1227, %v1152
        %1239 = vst.msk [vmem:[#allocation2 + $0x58] sm:$0xff] %vm1227, %v1154
        %1240 = vst.msk [vmem:[#allocation2 + $0x60] sm:$0xff] %vm1227, %v1156
        %1241 = vst.msk [vmem:[#allocation2 + $0x68] sm:$0xff] %vm1227, %v1158
        %1242 = vst.msk [vmem:[#allocation2 + $0x70] sm:$0xff] %vm1227, %v1160
        %1243 = vst.msk [vmem:[#allocation2 + $0x78] sm:$0xff] %vm1227, %v1162
        %1244 = vst.msk [vmem:[#allocation2 + $0x80] sm:$0xff] %vm1227, %v1164
        %1245 = vst.msk [vmem:[#allocation2 + $0x88] sm:$0xff] %vm1227, %v1166
        %1246 = vst.msk [vmem:[#allocation2 + $0x90] sm:$0xff] %vm1227, %v1168
        %1247 = vst.msk [vmem:[#allocation2 + $0x98] sm:$0xff] %vm1227, %v1170
        %1248 = vst.msk [vmem:[#allocation2 + $0xa0] sm:$0xff] %vm1227, %v1172
        %1249 = vst.msk [vmem:[#allocation2 + $0xa8] sm:$0xff] %vm1227, %v1174
        %1250 = vst.msk [vmem:[#allocation2 + $0xb0] sm:$0xff] %vm1227, %v1176
        %1251 = vst.msk [vmem:[#allocation2 + $0xb8] sm:$0xff] %vm1227, %v1178
        %1252 = vst.msk [vmem:[#allocation2 + $0xc0] sm:$0xff] %vm1227, %v1180
        %1253 = vst.msk [vmem:[#allocation2 + $0xc8] sm:$0xff] %vm1227, %v1182
        %1254 = vst.msk [vmem:[#allocation2 + $0xd0] sm:$0xff] %vm1227, %v1184
        %1255 = vst.msk [vmem:[#allocation2 + $0xd8] sm:$0xff] %vm1227, %v1186
        %1256 = vst.msk [vmem:[#allocation2 + $0xe0] sm:$0xff] %vm1227, %v1188
        %1257 = vst.msk [vmem:[#allocation2 + $0xe8] sm:$0xff] %vm1227, %v1190
        %1258 = vst.msk [vmem:[#allocation2 + $0xf0] sm:$0xff] %vm1227, %v1192
        %1259 = vst.msk [vmem:[#allocation2 + $0xf8] sm:$0xff] %vm1227, %v1194
        %s1260 = scalar_lea.vmem %s195, 48
        %v1261 = vld [vmem:[%s1260] sm:$0xff]
        %v1262 = vld [vmem:[%s1260 + $0x8] sm:$0xff]
        %v1263 = vld [vmem:[%s1260 + $0x18] sm:$0xff]
        %v1264 = vld [vmem:[%s1260 + $0x20] sm:$0xff]
        %v1265 = vld [vmem:[%s1260 + $0x30] sm:$0xff]
        %v1266 = vld [vmem:[%s1260 + $0x38] sm:$0xff]
        %v1267 = vld [vmem:[%s1260 + $0x48] sm:$0xff]
        %v1268 = vld [vmem:[%s1260 + $0x50] sm:$0xff]
        %v1269 = vld [vmem:[%s1260 + $0x60] sm:$0xff]
        %v1270 = vld [vmem:[%s1260 + $0x68] sm:$0xff]
        %v1271 = vld [vmem:[%s1260 + $0x78] sm:$0xff]
        %v1272 = vld [vmem:[%s1260 + $0x80] sm:$0xff]
        %v1273 = vld [vmem:[%s1260 + $0x90] sm:$0xff]
        %v1274 = vld [vmem:[%s1260 + $0x98] sm:$0xff]
        %v1275 = vld [vmem:[%s1260 + $0xa8] sm:$0xff]
        %v1276 = vld [vmem:[%s1260 + $0xb0] sm:$0xff]
        %v1277 = vld [vmem:[%s1260 + $0xc0] sm:$0xff]
        %v1278 = vld [vmem:[%s1260 + $0xc8] sm:$0xff]
        %v1279 = vld [vmem:[%s1260 + $0xd8] sm:$0xff]
        %v1280 = vld [vmem:[%s1260 + $0xe0] sm:$0xff]
        %v1281 = vld [vmem:[%s1260 + $0xf0] sm:$0xff]
        %v1282 = vld [vmem:[%s1260 + $0xf8] sm:$0xff]
        %v1283 = vld [vmem:[%s1260 + $0x108] sm:$0xff]
        %v1284 = vld [vmem:[%s1260 + $0x110] sm:$0xff]
        %v1285 = vld [vmem:[%s1260 + $0x120] sm:$0xff]
        %v1286 = vld [vmem:[%s1260 + $0x128] sm:$0xff]
        %v1287 = vld [vmem:[%s1260 + $0x138] sm:$0xff]
        %v1288 = vld [vmem:[%s1260 + $0x140] sm:$0xff]
        %v1289 = vld [vmem:[%s1260 + $0x150] sm:$0xff]
        %v1290 = vld [vmem:[%s1260 + $0x158] sm:$0xff]
        %v1291 = vld [vmem:[%s1260 + $0x168] sm:$0xff]
        %v1292 = vld [vmem:[%s1260 + $0x170] sm:$0xff]
        %1325 = vrot.lane.b32.xlu0 %v1261, 24
        %v1326 = vpop.permute.xlu0 %1325
        %1327 = vrot.lane.b32.xlu0 %v1262, 24
        %v1328 = vpop.permute.xlu0 %1327
        %1329 = vrot.lane.b32.xlu0 %v1263, 24
        %v1330 = vpop.permute.xlu0 %1329
        %1331 = vrot.lane.b32.xlu0 %v1264, 24
        %v1332 = vpop.permute.xlu0 %1331
        %1333 = vrot.lane.b32.xlu0 %v1265, 24
        %v1334 = vpop.permute.xlu0 %1333
        %1335 = vrot.lane.b32.xlu0 %v1266, 24
        %v1336 = vpop.permute.xlu0 %1335
        %1337 = vrot.lane.b32.xlu0 %v1267, 24
        %v1338 = vpop.permute.xlu0 %1337
        %1339 = vrot.lane.b32.xlu0 %v1268, 24
        %v1340 = vpop.permute.xlu0 %1339
        %1341 = vrot.lane.b32.xlu0 %v1269, 24
        %v1342 = vpop.permute.xlu0 %1341
        %1343 = vrot.lane.b32.xlu0 %v1270, 24
        %v1344 = vpop.permute.xlu0 %1343
        %1345 = vrot.lane.b32.xlu0 %v1271, 24
        %v1346 = vpop.permute.xlu0 %1345
        %1347 = vrot.lane.b32.xlu0 %v1272, 24
        %v1348 = vpop.permute.xlu0 %1347
        %1349 = vrot.lane.b32.xlu0 %v1273, 24
        %v1350 = vpop.permute.xlu0 %1349
        %1351 = vrot.lane.b32.xlu0 %v1274, 24
        %v1352 = vpop.permute.xlu0 %1351
        %1353 = vrot.lane.b32.xlu0 %v1275, 24
        %v1354 = vpop.permute.xlu0 %1353
        %1355 = vrot.lane.b32.xlu0 %v1276, 24
        %v1356 = vpop.permute.xlu0 %1355
        %1357 = vrot.lane.b32.xlu0 %v1277, 24
        %v1358 = vpop.permute.xlu0 %1357
        %1359 = vrot.lane.b32.xlu0 %v1278, 24
        %v1360 = vpop.permute.xlu0 %1359
        %1361 = vrot.lane.b32.xlu0 %v1279, 24
        %v1362 = vpop.permute.xlu0 %1361
        %1363 = vrot.lane.b32.xlu0 %v1280, 24
        %v1364 = vpop.permute.xlu0 %1363
        %1365 = vrot.lane.b32.xlu0 %v1281, 24
        %v1366 = vpop.permute.xlu0 %1365
        %1367 = vrot.lane.b32.xlu0 %v1282, 24
        %v1368 = vpop.permute.xlu0 %1367
        %1369 = vrot.lane.b32.xlu0 %v1283, 24
        %v1370 = vpop.permute.xlu0 %1369
        %1371 = vrot.lane.b32.xlu0 %v1284, 24
        %v1372 = vpop.permute.xlu0 %1371
        %1373 = vrot.lane.b32.xlu0 %v1285, 24
        %v1374 = vpop.permute.xlu0 %1373
        %1375 = vrot.lane.b32.xlu0 %v1286, 24
        %v1376 = vpop.permute.xlu0 %1375
        %1377 = vrot.lane.b32.xlu0 %v1287, 24
        %v1378 = vpop.permute.xlu0 %1377
        %1379 = vrot.lane.b32.xlu0 %v1288, 24
        %v1380 = vpop.permute.xlu0 %1379
        %1381 = vrot.lane.b32.xlu0 %v1289, 24
        %v1382 = vpop.permute.xlu0 %1381
        %1383 = vrot.lane.b32.xlu0 %v1290, 24
        %v1384 = vpop.permute.xlu0 %1383
        %1385 = vrot.lane.b32.xlu0 %v1291, 24
        %v1386 = vpop.permute.xlu0 %1385
        %1387 = vrot.lane.b32.xlu0 %v1292, 24
        %v1388 = vpop.permute.xlu0 %1387
        %vm1421 = vcmask 228544
        %1422 = vst.msk [vmem:[#allocation2] sm:$0xff] %vm1421, %v1326
        %1423 = vst.msk [vmem:[#allocation2 + $0x8] sm:$0xff] %vm1421, %v1328
        %1424 = vst.msk [vmem:[#allocation2 + $0x10] sm:$0xff] %vm1421, %v1330
        %1425 = vst.msk [vmem:[#allocation2 + $0x18] sm:$0xff] %vm1421, %v1332
        %1426 = vst.msk [vmem:[#allocation2 + $0x20] sm:$0xff] %vm1421, %v1334
        %1427 = vst.msk [vmem:[#allocation2 + $0x28] sm:$0xff] %vm1421, %v1336
        %1428 = vst.msk [vmem:[#allocation2 + $0x30] sm:$0xff] %vm1421, %v1338
        %1429 = vst.msk [vmem:[#allocation2 + $0x38] sm:$0xff] %vm1421, %v1340
        %1430 = vst.msk [vmem:[#allocation2 + $0x40] sm:$0xff] %vm1421, %v1342
        %1431 = vst.msk [vmem:[#allocation2 + $0x48] sm:$0xff] %vm1421, %v1344
        %1432 = vst.msk [vmem:[#allocation2 + $0x50] sm:$0xff] %vm1421, %v1346
        %1433 = vst.msk [vmem:[#allocation2 + $0x58] sm:$0xff] %vm1421, %v1348
        %1434 = vst.msk [vmem:[#allocation2 + $0x60] sm:$0xff] %vm1421, %v1350
        %1435 = vst.msk [vmem:[#allocation2 + $0x68] sm:$0xff] %vm1421, %v1352
        %1436 = vst.msk [vmem:[#allocation2 + $0x70] sm:$0xff] %vm1421, %v1354
        %1437 = vst.msk [vmem:[#allocation2 + $0x78] sm:$0xff] %vm1421, %v1356
        %1438 = vst.msk [vmem:[#allocation2 + $0x80] sm:$0xff] %vm1421, %v1358
        %1439 = vst.msk [vmem:[#allocation2 + $0x88] sm:$0xff] %vm1421, %v1360
        %1440 = vst.msk [vmem:[#allocation2 + $0x90] sm:$0xff] %vm1421, %v1362
        %1441 = vst.msk [vmem:[#allocation2 + $0x98] sm:$0xff] %vm1421, %v1364
        %1442 = vst.msk [vmem:[#allocation2 + $0xa0] sm:$0xff] %vm1421, %v1366
        %1443 = vst.msk [vmem:[#allocation2 + $0xa8] sm:$0xff] %vm1421, %v1368
        %1444 = vst.msk [vmem:[#allocation2 + $0xb0] sm:$0xff] %vm1421, %v1370
        %1445 = vst.msk [vmem:[#allocation2 + $0xb8] sm:$0xff] %vm1421, %v1372
        %1446 = vst.msk [vmem:[#allocation2 + $0xc0] sm:$0xff] %vm1421, %v1374
        %1447 = vst.msk [vmem:[#allocation2 + $0xc8] sm:$0xff] %vm1421, %v1376
        %1448 = vst.msk [vmem:[#allocation2 + $0xd0] sm:$0xff] %vm1421, %v1378
        %1449 = vst.msk [vmem:[#allocation2 + $0xd8] sm:$0xff] %vm1421, %v1380
        %1450 = vst.msk [vmem:[#allocation2 + $0xe0] sm:$0xff] %vm1421, %v1382
        %1451 = vst.msk [vmem:[#allocation2 + $0xe8] sm:$0xff] %vm1421, %v1384
        %1452 = vst.msk [vmem:[#allocation2 + $0xf0] sm:$0xff] %vm1421, %v1386
        %1453 = vst.msk [vmem:[#allocation2 + $0xf8] sm:$0xff] %vm1421, %v1388
        %v1454 = vld [vmem:[%s1260 + $0x1] sm:$0xff]
        %v1455 = vld [vmem:[%s1260 + $0x9] sm:$0xff]
        %v1456 = vld [vmem:[%s1260 + $0x19] sm:$0xff]
        %v1457 = vld [vmem:[%s1260 + $0x21] sm:$0xff]
        %v1458 = vld [vmem:[%s1260 + $0x31] sm:$0xff]
        %v1459 = vld [vmem:[%s1260 + $0x39] sm:$0xff]
        %v1460 = vld [vmem:[%s1260 + $0x49] sm:$0xff]
        %v1461 = vld [vmem:[%s1260 + $0x51] sm:$0xff]
        %v1462 = vld [vmem:[%s1260 + $0x61] sm:$0xff]
        %v1463 = vld [vmem:[%s1260 + $0x69] sm:$0xff]
        %v1464 = vld [vmem:[%s1260 + $0x79] sm:$0xff]
        %v1465 = vld [vmem:[%s1260 + $0x81] sm:$0xff]
        %v1466 = vld [vmem:[%s1260 + $0x91] sm:$0xff]
        %v1467 = vld [vmem:[%s1260 + $0x99] sm:$0xff]
        %v1468 = vld [vmem:[%s1260 + $0xa9] sm:$0xff]
        %v1469 = vld [vmem:[%s1260 + $0xb1] sm:$0xff]
        %v1470 = vld [vmem:[%s1260 + $0xc1] sm:$0xff]
        %v1471 = vld [vmem:[%s1260 + $0xc9] sm:$0xff]
        %v1472 = vld [vmem:[%s1260 + $0xd9] sm:$0xff]
        %v1473 = vld [vmem:[%s1260 + $0xe1] sm:$0xff]
        %v1474 = vld [vmem:[%s1260 + $0xf1] sm:$0xff]
        %v1475 = vld [vmem:[%s1260 + $0xf9] sm:$0xff]
        %v1476 = vld [vmem:[%s1260 + $0x109] sm:$0xff]
        %v1477 = vld [vmem:[%s1260 + $0x111] sm:$0xff]
        %v1478 = vld [vmem:[%s1260 + $0x121] sm:$0xff]
        %v1479 = vld [vmem:[%s1260 + $0x129] sm:$0xff]
        %v1480 = vld [vmem:[%s1260 + $0x139] sm:$0xff]
        %v1481 = vld [vmem:[%s1260 + $0x141] sm:$0xff]
        %v1482 = vld [vmem:[%s1260 + $0x151] sm:$0xff]
        %v1483 = vld [vmem:[%s1260 + $0x159] sm:$0xff]
        %v1484 = vld [vmem:[%s1260 + $0x169] sm:$0xff]
        %v1485 = vld [vmem:[%s1260 + $0x171] sm:$0xff]
        %1518 = vrot.lane.b32.xlu0 %v1454, 28
        %v1519 = vpop.permute.xlu0 %1518
        %1520 = vrot.lane.b32.xlu0 %v1455, 28
        %v1521 = vpop.permute.xlu0 %1520
        %1522 = vrot.lane.b32.xlu0 %v1456, 28
        %v1523 = vpop.permute.xlu0 %1522
        %1524 = vrot.lane.b32.xlu0 %v1457, 28
        %v1525 = vpop.permute.xlu0 %1524
        %1526 = vrot.lane.b32.xlu0 %v1458, 28
        %v1527 = vpop.permute.xlu0 %1526
        %1528 = vrot.lane.b32.xlu0 %v1459, 28
        %v1529 = vpop.permute.xlu0 %1528
        %1530 = vrot.lane.b32.xlu0 %v1460, 28
        %v1531 = vpop.permute.xlu0 %1530
        %1532 = vrot.lane.b32.xlu0 %v1461, 28
        %v1533 = vpop.permute.xlu0 %1532
        %1534 = vrot.lane.b32.xlu0 %v1462, 28
        %v1535 = vpop.permute.xlu0 %1534
        %1536 = vrot.lane.b32.xlu0 %v1463, 28
        %v1537 = vpop.permute.xlu0 %1536
        %1538 = vrot.lane.b32.xlu0 %v1464, 28
        %v1539 = vpop.permute.xlu0 %1538
        %1540 = vrot.lane.b32.xlu0 %v1465, 28
        %v1541 = vpop.permute.xlu0 %1540
        %1542 = vrot.lane.b32.xlu0 %v1466, 28
        %v1543 = vpop.permute.xlu0 %1542
        %1544 = vrot.lane.b32.xlu0 %v1467, 28
        %v1545 = vpop.permute.xlu0 %1544
        %1546 = vrot.lane.b32.xlu0 %v1468, 28
        %v1547 = vpop.permute.xlu0 %1546
        %1548 = vrot.lane.b32.xlu0 %v1469, 28
        %v1549 = vpop.permute.xlu0 %1548
        %1550 = vrot.lane.b32.xlu0 %v1470, 28
        %v1551 = vpop.permute.xlu0 %1550
        %1552 = vrot.lane.b32.xlu0 %v1471, 28
        %v1553 = vpop.permute.xlu0 %1552
        %1554 = vrot.lane.b32.xlu0 %v1472, 28
        %v1555 = vpop.permute.xlu0 %1554
        %1556 = vrot.lane.b32.xlu0 %v1473, 28
        %v1557 = vpop.permute.xlu0 %1556
        %1558 = vrot.lane.b32.xlu0 %v1474, 28
        %v1559 = vpop.permute.xlu0 %1558
        %1560 = vrot.lane.b32.xlu0 %v1475, 28
        %v1561 = vpop.permute.xlu0 %1560
        %1562 = vrot.lane.b32.xlu0 %v1476, 28
        %v1563 = vpop.permute.xlu0 %1562
        %1564 = vrot.lane.b32.xlu0 %v1477, 28
        %v1565 = vpop.permute.xlu0 %1564
        %1566 = vrot.lane.b32.xlu0 %v1478, 28
        %v1567 = vpop.permute.xlu0 %1566
        %1568 = vrot.lane.b32.xlu0 %v1479, 28
        %v1569 = vpop.permute.xlu0 %1568
        %1570 = vrot.lane.b32.xlu0 %v1480, 28
        %v1571 = vpop.permute.xlu0 %1570
        %1572 = vrot.lane.b32.xlu0 %v1481, 28
        %v1573 = vpop.permute.xlu0 %1572
        %1574 = vrot.lane.b32.xlu0 %v1482, 28
        %v1575 = vpop.permute.xlu0 %1574
        %1576 = vrot.lane.b32.xlu0 %v1483, 28
        %v1577 = vpop.permute.xlu0 %1576
        %1578 = vrot.lane.b32.xlu0 %v1484, 28
        %v1579 = vpop.permute.xlu0 %1578
        %1580 = vrot.lane.b32.xlu0 %v1485, 28
        %v1581 = vpop.permute.xlu0 %1580
        %vm1614 = vcmask 261344
        %1615 = vst.msk [vmem:[#allocation2] sm:$0xff] %vm1614, %v1519
        %1616 = vst.msk [vmem:[#allocation2 + $0x8] sm:$0xff] %vm1614, %v1521
        %1617 = vst.msk [vmem:[#allocation2 + $0x10] sm:$0xff] %vm1614, %v1523
        %1618 = vst.msk [vmem:[#allocation2 + $0x18] sm:$0xff] %vm1614, %v1525
        %1619 = vst.msk [vmem:[#allocation2 + $0x20] sm:$0xff] %vm1614, %v1527
        %1620 = vst.msk [vmem:[#allocation2 + $0x28] sm:$0xff] %vm1614, %v1529
        %1621 = vst.msk [vmem:[#allocation2 + $0x30] sm:$0xff] %vm1614, %v1531
        %1622 = vst.msk [vmem:[#allocation2 + $0x38] sm:$0xff] %vm1614, %v1533
        %1623 = vst.msk [vmem:[#allocation2 + $0x40] sm:$0xff] %vm1614, %v1535
        %1624 = vst.msk [vmem:[#allocation2 + $0x48] sm:$0xff] %vm1614, %v1537
        %1625 = vst.msk [vmem:[#allocation2 + $0x50] sm:$0xff] %vm1614, %v1539
        %1626 = vst.msk [vmem:[#allocation2 + $0x58] sm:$0xff] %vm1614, %v1541
        %1627 = vst.msk [vmem:[#allocation2 + $0x60] sm:$0xff] %vm1614, %v1543
        %1628 = vst.msk [vmem:[#allocation2 + $0x68] sm:$0xff] %vm1614, %v1545
        %1629 = vst.msk [vmem:[#allocation2 + $0x70] sm:$0xff] %vm1614, %v1547
        %1630 = vst.msk [vmem:[#allocation2 + $0x78] sm:$0xff] %vm1614, %v1549
        %1631 = vst.msk [vmem:[#allocation2 + $0x80] sm:$0xff] %vm1614, %v1551
        %1632 = vst.msk [vmem:[#allocation2 + $0x88] sm:$0xff] %vm1614, %v1553
        %1633 = vst.msk [vmem:[#allocation2 + $0x90] sm:$0xff] %vm1614, %v1555
        %1634 = vst.msk [vmem:[#allocation2 + $0x98] sm:$0xff] %vm1614, %v1557
        %1635 = vst.msk [vmem:[#allocation2 + $0xa0] sm:$0xff] %vm1614, %v1559
        %1636 = vst.msk [vmem:[#allocation2 + $0xa8] sm:$0xff] %vm1614, %v1561
        %1637 = vst.msk [vmem:[#allocation2 + $0xb0] sm:$0xff] %vm1614, %v1563
        %1638 = vst.msk [vmem:[#allocation2 + $0xb8] sm:$0xff] %vm1614, %v1565
        %1639 = vst.msk [vmem:[#allocation2 + $0xc0] sm:$0xff] %vm1614, %v1567
        %1640 = vst.msk [vmem:[#allocation2 + $0xc8] sm:$0xff] %vm1614, %v1569
        %1641 = vst.msk [vmem:[#allocation2 + $0xd0] sm:$0xff] %vm1614, %v1571
        %1642 = vst.msk [vmem:[#allocation2 + $0xd8] sm:$0xff] %vm1614, %v1573
        %1643 = vst.msk [vmem:[#allocation2 + $0xe0] sm:$0xff] %vm1614, %v1575
        %1644 = vst.msk [vmem:[#allocation2 + $0xe8] sm:$0xff] %vm1614, %v1577
        %1645 = vst.msk [vmem:[#allocation2 + $0xf0] sm:$0xff] %vm1614, %v1579
        %1646 = vst.msk [vmem:[#allocation2 + $0xf8] sm:$0xff] %vm1614, %v1581
        %v1647 = vld [vmem:[%s1260 + $0x2] sm:$0xff]
        %v1648 = vld [vmem:[%s1260 + $0xa] sm:$0xff]
        %v1649 = vld [vmem:[%s1260 + $0x1a] sm:$0xff]
        %v1650 = vld [vmem:[%s1260 + $0x22] sm:$0xff]
        %v1651 = vld [vmem:[%s1260 + $0x32] sm:$0xff]
        %v1652 = vld [vmem:[%s1260 + $0x3a] sm:$0xff]
        %v1653 = vld [vmem:[%s1260 + $0x4a] sm:$0xff]
        %v1654 = vld [vmem:[%s1260 + $0x52] sm:$0xff]
        %v1655 = vld [vmem:[%s1260 + $0x62] sm:$0xff]
        %v1656 = vld [vmem:[%s1260 + $0x6a] sm:$0xff]
        %v1657 = vld [vmem:[%s1260 + $0x7a] sm:$0xff]
        %v1658 = vld [vmem:[%s1260 + $0x82] sm:$0xff]
        %v1659 = vld [vmem:[%s1260 + $0x92] sm:$0xff]
        %v1660 = vld [vmem:[%s1260 + $0x9a] sm:$0xff]
        %v1661 = vld [vmem:[%s1260 + $0xaa] sm:$0xff]
        %v1662 = vld [vmem:[%s1260 + $0xb2] sm:$0xff]
        %v1663 = vld [vmem:[%s1260 + $0xc2] sm:$0xff]
        %v1664 = vld [vmem:[%s1260 + $0xca] sm:$0xff]
        %v1665 = vld [vmem:[%s1260 + $0xda] sm:$0xff]
        %v1666 = vld [vmem:[%s1260 + $0xe2] sm:$0xff]
        %v1667 = vld [vmem:[%s1260 + $0xf2] sm:$0xff]
        %v1668 = vld [vmem:[%s1260 + $0xfa] sm:$0xff]
        %v1669 = vld [vmem:[%s1260 + $0x10a] sm:$0xff]
        %v1670 = vld [vmem:[%s1260 + $0x112] sm:$0xff]
        %v1671 = vld [vmem:[%s1260 + $0x122] sm:$0xff]
        %v1672 = vld [vmem:[%s1260 + $0x12a] sm:$0xff]
        %v1673 = vld [vmem:[%s1260 + $0x13a] sm:$0xff]
        %v1674 = vld [vmem:[%s1260 + $0x142] sm:$0xff]
        %v1675 = vld [vmem:[%s1260 + $0x152] sm:$0xff]
        %v1676 = vld [vmem:[%s1260 + $0x15a] sm:$0xff]
        %v1677 = vld [vmem:[%s1260 + $0x16a] sm:$0xff]
        %v1678 = vld [vmem:[%s1260 + $0x172] sm:$0xff]
        %1711 = vrot.lane.b32.xlu0 %v1647, 32
        %v1712 = vpop.permute.xlu0 %1711
        %1713 = vrot.lane.b32.xlu0 %v1648, 32
        %v1714 = vpop.permute.xlu0 %1713
        %1715 = vrot.lane.b32.xlu0 %v1649, 32
        %v1716 = vpop.permute.xlu0 %1715
        %1717 = vrot.lane.b32.xlu0 %v1650, 32
        %v1718 = vpop.permute.xlu0 %1717
        %1719 = vrot.lane.b32.xlu0 %v1651, 32
        %v1720 = vpop.permute.xlu0 %1719
        %1721 = vrot.lane.b32.xlu0 %v1652, 32
        %v1722 = vpop.permute.xlu0 %1721
        %1723 = vrot.lane.b32.xlu0 %v1653, 32
        %v1724 = vpop.permute.xlu0 %1723
        %1725 = vrot.lane.b32.xlu0 %v1654, 32
        %v1726 = vpop.permute.xlu0 %1725
        %1727 = vrot.lane.b32.xlu0 %v1655, 32
        %v1728 = vpop.permute.xlu0 %1727
        %1729 = vrot.lane.b32.xlu0 %v1656, 32
        %v1730 = vpop.permute.xlu0 %1729
        %1731 = vrot.lane.b32.xlu0 %v1657, 32
        %v1732 = vpop.permute.xlu0 %1731
        %1733 = vrot.lane.b32.xlu0 %v1658, 32
        %v1734 = vpop.permute.xlu0 %1733
        %1735 = vrot.lane.b32.xlu0 %v1659, 32
        %v1736 = vpop.permute.xlu0 %1735
        %1737 = vrot.lane.b32.xlu0 %v1660, 32
        %v1738 = vpop.permute.xlu0 %1737
        %1739 = vrot.lane.b32.xlu0 %v1661, 32
        %v1740 = vpop.permute.xlu0 %1739
        %1741 = vrot.lane.b32.xlu0 %v1662, 32
        %v1742 = vpop.permute.xlu0 %1741
        %1743 = vrot.lane.b32.xlu0 %v1663, 32
        %v1744 = vpop.permute.xlu0 %1743
        %1745 = vrot.lane.b32.xlu0 %v1664, 32
        %v1746 = vpop.permute.xlu0 %1745
        %1747 = vrot.lane.b32.xlu0 %v1665, 32
        %v1748 = vpop.permute.xlu0 %1747
        %1749 = vrot.lane.b32.xlu0 %v1666, 32
        %v1750 = vpop.permute.xlu0 %1749
        %1751 = vrot.lane.b32.xlu0 %v1667, 32
        %v1752 = vpop.permute.xlu0 %1751
        %1753 = vrot.lane.b32.xlu0 %v1668, 32
        %v1754 = vpop.permute.xlu0 %1753
        %1755 = vrot.lane.b32.xlu0 %v1669, 32
        %v1756 = vpop.permute.xlu0 %1755
        %1757 = vrot.lane.b32.xlu0 %v1670, 32
        %v1758 = vpop.permute.xlu0 %1757
        %1759 = vrot.lane.b32.xlu0 %v1671, 32
        %v1760 = vpop.permute.xlu0 %1759
        %1761 = vrot.lane.b32.xlu0 %v1672, 32
        %v1762 = vpop.permute.xlu0 %1761
        %1763 = vrot.lane.b32.xlu0 %v1673, 32
        %v1764 = vpop.permute.xlu0 %1763
        %1765 = vrot.lane.b32.xlu0 %v1674, 32
        %v1766 = vpop.permute.xlu0 %1765
        %1767 = vrot.lane.b32.xlu0 %v1675, 32
        %v1768 = vpop.permute.xlu0 %1767
        %1769 = vrot.lane.b32.xlu0 %v1676, 32
        %v1770 = vpop.permute.xlu0 %1769
        %1771 = vrot.lane.b32.xlu0 %v1677, 32
        %v1772 = vpop.permute.xlu0 %1771
        %1773 = vrot.lane.b32.xlu0 %v1678, 32
        %v1774 = vpop.permute.xlu0 %1773
        %vm1807 = vcmask 294144
        %1808 = vst.msk [vmem:[#allocation2] sm:$0xff] %vm1807, %v1712
        %1809 = vst.msk [vmem:[#allocation2 + $0x8] sm:$0xff] %vm1807, %v1714
        %1810 = vst.msk [vmem:[#allocation2 + $0x10] sm:$0xff] %vm1807, %v1716
        %1811 = vst.msk [vmem:[#allocation2 + $0x18] sm:$0xff] %vm1807, %v1718
        %1812 = vst.msk [vmem:[#allocation2 + $0x20] sm:$0xff] %vm1807, %v1720
        %1813 = vst.msk [vmem:[#allocation2 + $0x28] sm:$0xff] %vm1807, %v1722
        %1814 = vst.msk [vmem:[#allocation2 + $0x30] sm:$0xff] %vm1807, %v1724
        %1815 = vst.msk [vmem:[#allocation2 + $0x38] sm:$0xff] %vm1807, %v1726
        %1816 = vst.msk [vmem:[#allocation2 + $0x40] sm:$0xff] %vm1807, %v1728
        %1817 = vst.msk [vmem:[#allocation2 + $0x48] sm:$0xff] %vm1807, %v1730
        %1818 = vst.msk [vmem:[#allocation2 + $0x50] sm:$0xff] %vm1807, %v1732
        %1819 = vst.msk [vmem:[#allocation2 + $0x58] sm:$0xff] %vm1807, %v1734
        %1820 = vst.msk [vmem:[#allocation2 + $0x60] sm:$0xff] %vm1807, %v1736
        %1821 = vst.msk [vmem:[#allocation2 + $0x68] sm:$0xff] %vm1807, %v1738
        %1822 = vst.msk [vmem:[#allocation2 + $0x70] sm:$0xff] %vm1807, %v1740
        %1823 = vst.msk [vmem:[#allocation2 + $0x78] sm:$0xff] %vm1807, %v1742
        %1824 = vst.msk [vmem:[#allocation2 + $0x80] sm:$0xff] %vm1807, %v1744
        %1825 = vst.msk [vmem:[#allocation2 + $0x88] sm:$0xff] %vm1807, %v1746
        %1826 = vst.msk [vmem:[#allocation2 + $0x90] sm:$0xff] %vm1807, %v1748
        %1827 = vst.msk [vmem:[#allocation2 + $0x98] sm:$0xff] %vm1807, %v1750
        %1828 = vst.msk [vmem:[#allocation2 + $0xa0] sm:$0xff] %vm1807, %v1752
        %1829 = vst.msk [vmem:[#allocation2 + $0xa8] sm:$0xff] %vm1807, %v1754
        %1830 = vst.msk [vmem:[#allocation2 + $0xb0] sm:$0xff] %vm1807, %v1756
        %1831 = vst.msk [vmem:[#allocation2 + $0xb8] sm:$0xff] %vm1807, %v1758
        %1832 = vst.msk [vmem:[#allocation2 + $0xc0] sm:$0xff] %vm1807, %v1760
        %1833 = vst.msk [vmem:[#allocation2 + $0xc8] sm:$0xff] %vm1807, %v1762
        %1834 = vst.msk [vmem:[#allocation2 + $0xd0] sm:$0xff] %vm1807, %v1764
        %1835 = vst.msk [vmem:[#allocation2 + $0xd8] sm:$0xff] %vm1807, %v1766
        %1836 = vst.msk [vmem:[#allocation2 + $0xe0] sm:$0xff] %vm1807, %v1768
        %1837 = vst.msk [vmem:[#allocation2 + $0xe8] sm:$0xff] %vm1807, %v1770
        %1838 = vst.msk [vmem:[#allocation2 + $0xf0] sm:$0xff] %vm1807, %v1772
        %1839 = vst.msk [vmem:[#allocation2 + $0xf8] sm:$0xff] %vm1807, %v1774
        %v1840 = vld [vmem:[#allocation2] sm:$0xff]
        %v1841 = vld [vmem:[#allocation2 + $0x8] sm:$0xff]
        %v1842 = vld [vmem:[#allocation2 + $0x10] sm:$0xff]
        %v1843 = vld [vmem:[#allocation2 + $0x18] sm:$0xff]
        %v1844 = vld [vmem:[#allocation2 + $0x20] sm:$0xff]
        %v1845 = vld [vmem:[#allocation2 + $0x28] sm:$0xff]
        %v1846 = vld [vmem:[#allocation2 + $0x30] sm:$0xff]
        %v1847 = vld [vmem:[#allocation2 + $0x38] sm:$0xff]
        %v1848 = vld [vmem:[#allocation2 + $0x40] sm:$0xff]
        %v1849 = vld [vmem:[#allocation2 + $0x48] sm:$0xff]
        %v1850 = vld [vmem:[#allocation2 + $0x50] sm:$0xff]
        %v1851 = vld [vmem:[#allocation2 + $0x58] sm:$0xff]
        %v1852 = vld [vmem:[#allocation2 + $0x60] sm:$0xff]
        %v1853 = vld [vmem:[#allocation2 + $0x68] sm:$0xff]
        %v1854 = vld [vmem:[#allocation2 + $0x70] sm:$0xff]
        %v1855 = vld [vmem:[#allocation2 + $0x78] sm:$0xff]
        %v1856 = vld [vmem:[#allocation2 + $0x80] sm:$0xff]
        %v1857 = vld [vmem:[#allocation2 + $0x88] sm:$0xff]
        %v1858 = vld [vmem:[#allocation2 + $0x90] sm:$0xff]
        %v1859 = vld [vmem:[#allocation2 + $0x98] sm:$0xff]
        %v1860 = vld [vmem:[#allocation2 + $0xa0] sm:$0xff]
        %v1861 = vld [vmem:[#allocation2 + $0xa8] sm:$0xff]
        %v1862 = vld [vmem:[#allocation2 + $0xb0] sm:$0xff]
        %v1863 = vld [vmem:[#allocation2 + $0xb8] sm:$0xff]
        %v1864 = vld [vmem:[#allocation2 + $0xc0] sm:$0xff]
        %v1865 = vld [vmem:[#allocation2 + $0xc8] sm:$0xff]
        %v1866 = vld [vmem:[#allocation2 + $0xd0] sm:$0xff]
        %v1867 = vld [vmem:[#allocation2 + $0xd8] sm:$0xff]
        %v1868 = vld [vmem:[#allocation2 + $0xe0] sm:$0xff]
        %v1869 = vld [vmem:[#allocation2 + $0xe8] sm:$0xff]
        %v1870 = vld [vmem:[#allocation2 + $0xf0] sm:$0xff]
        %v1871 = vld [vmem:[#allocation2 + $0xf8] sm:$0xff]
        %v1872 = vpack.c.bf16 %v1841, %v1840
        %v1873 = vpack.c.bf16 %v1843, %v1842
        %v1874 = vpack.c.bf16 %v1845, %v1844
        %v1875 = vpack.c.bf16 %v1847, %v1846
        %v1876 = vpack.c.bf16 %v1849, %v1848
        %v1877 = vpack.c.bf16 %v1851, %v1850
        %v1878 = vpack.c.bf16 %v1853, %v1852
        %v1879 = vpack.c.bf16 %v1855, %v1854
        %v1880 = vpack.c.bf16 %v1857, %v1856
        %v1881 = vpack.c.bf16 %v1859, %v1858
        %v1882 = vpack.c.bf16 %v1861, %v1860
        %v1883 = vpack.c.bf16 %v1863, %v1862
        %v1884 = vpack.c.bf16 %v1865, %v1864
        %v1885 = vpack.c.bf16 %v1867, %v1866
        %v1886 = vpack.c.bf16 %v1869, %v1868
        %v1887 = vpack.c.bf16 %v1871, %v1870
        %v1888 = vld [vmem:[%s1] sm:$0xf]
        %v1889 = vld [vmem:[%s1 + $0x4] sm:$0xf]
        %v1890 = vld [vmem:[%s1 + $0x8] sm:$0xf]
        %v1891 = vld [vmem:[%s1 + $0xc] sm:$0xf]
        %v1892 = vld [vmem:[%s1 + $0x10] sm:$0xf]
        %v1893 = vld [vmem:[%s1 + $0x14] sm:$0xf]
        %v1894 = vld [vmem:[%s1 + $0x18] sm:$0xf]
        %v1895 = vld [vmem:[%s1 + $0x1c] sm:$0xf]
        %v1896 = vld [vmem:[%s1 + $0x20] sm:$0xf]
        %v1897 = vld [vmem:[%s1 + $0x24] sm:$0xf]
        %v1898 = vld [vmem:[%s1 + $0x28] sm:$0xf]
        %v1899 = vld [vmem:[%s1 + $0x2c] sm:$0xf]
        %v1900 = vld [vmem:[%s1 + $0x30] sm:$0xf]
        %v1901 = vld [vmem:[%s1 + $0x34] sm:$0xf]
        %v1902 = vld [vmem:[%s1 + $0x38] sm:$0xf]
        %v1903 = vld [vmem:[%s1 + $0x3c] sm:$0xf]
        %v1920 = vunpack.c.l.b16 %v1888
        %v1921 = vunpack.c.l.b16 %v1889
        %v1922 = vunpack.c.l.b16 %v1890
        %v1923 = vunpack.c.l.b16 %v1891
        %v1924 = vunpack.c.l.b16 %v1892
        %v1925 = vunpack.c.l.b16 %v1893
        %v1926 = vunpack.c.l.b16 %v1894
        %v1927 = vunpack.c.l.b16 %v1895
        %v1928 = vunpack.c.l.b16 %v1896
        %v1929 = vunpack.c.l.b16 %v1897
        %v1930 = vunpack.c.l.b16 %v1898
        %v1931 = vunpack.c.l.b16 %v1899
        %v1932 = vunpack.c.l.b16 %v1900
        %v1933 = vunpack.c.l.b16 %v1901
        %v1934 = vunpack.c.l.b16 %v1902
        %v1935 = vunpack.c.l.b16 %v1903
        %v1936 = vpack.c.b16 %v1921, %v1920
        %v1937 = vpack.c.b16 %v1923, %v1922
        %v1938 = vpack.c.b16 %v1925, %v1924
        %v1939 = vpack.c.b16 %v1927, %v1926
        %v1940 = vpack.c.b16 %v1929, %v1928
        %v1941 = vpack.c.b16 %v1931, %v1930
        %v1942 = vpack.c.b16 %v1933, %v1932
        %v1943 = vpack.c.b16 %v1935, %v1934
        %1952 = vmatprep.subr.bf16.mxu0 0
        %1953 = vmatpush1.bf16.msra.mxu0 %v1936
        %1954 = vmatprep.subr.bf16.mxu0 0
        %1955 = vmatpush1.bf16.msra.mxu0 %v1937
        %1956 = vmatprep.subr.bf16.mxu0 0
        %1957 = vmatpush1.bf16.msra.mxu0 %v1938
        %1958 = vmatprep.subr.bf16.mxu0 0
        %1959 = vmatpush1.bf16.msra.mxu0 %v1939
        %1960 = vmatprep.subr.bf16.mxu0 0
        %1961 = vmatpush1.bf16.msra.mxu0 %v1940
        %1962 = vmatprep.subr.bf16.mxu0 0
        %1963 = vmatpush1.bf16.msra.mxu0 %v1941
        %1964 = vmatprep.subr.bf16.mxu0 0
        %1965 = vmatpush1.bf16.msra.mxu0 %v1942
        %1966 = vmatprep.subr.bf16.mxu0 0
        %1967 = vmatpush1.bf16.msra.mxu0 %v1943
        %1968 = vmatprep.subr.bf16.mxu0 0
        %1969 = vmatpush1.bf16.msra.mxu0 0
        %1970 = vmatprep.subr.bf16.mxu0 0
        %1971 = vmatpush1.bf16.msra.mxu0 0
        %1972 = vmatprep.subr.bf16.mxu0 0
        %1973 = vmatpush1.bf16.msra.mxu0 0
        %1974 = vmatprep.subr.bf16.mxu0 0
        %1975 = vmatpush1.bf16.msra.mxu0 0
        %1976 = vmatprep.subr.bf16.mxu0 0
        %1977 = vmatpush1.bf16.msra.mxu0 0
        %1978 = vmatprep.subr.bf16.mxu0 0
        %1979 = vmatpush1.bf16.msra.mxu0 0
        %1980 = vmatprep.subr.bf16.mxu0 0
        %1981 = vmatpush1.bf16.msra.mxu0 0
        %1982 = vmatprep.subr.bf16.mxu0 0
        %1983 = vmatpush1.bf16.msra.mxu0 0
        %1984 = vmatprep.mubr.bf16.mxu0 0
        %1985 = vmatmul.mubr.bf16.gmra.mrb[0].mxu0 %v1872
        %v1986 = vpop.f32.mrb[0].mxu0
        %v1987 = vadd.f32 0.0, %v1986
        %v1988 = vpop.f32.mrb[0].mxu0
        %v1989 = vpop.f32.mrb[0].mxu0
        %v1990 = vadd.f32 0.0, %v1989
        %v1991 = vpop.f32.mrb[0].mxu0
        %1992 = vmatprep.mubr.bf16.mxu0 0
        %1993 = vmatmul.mubr.bf16.gmra.mrb[0].mxu0 %v1873
        %v1994 = vpop.f32.mrb[0].mxu0
        %v1995 = vadd.f32 0.0, %v1994
        %v1996 = vpop.f32.mrb[0].mxu0
        %v1997 = vpop.f32.mrb[0].mxu0
        %v1998 = vadd.f32 0.0, %v1997
        %v1999 = vpop.f32.mrb[0].mxu0
        %2000 = vmatprep.mubr.bf16.mxu0 0
        %2001 = vmatmul.mubr.bf16.gmra.mrb[0].mxu0 %v1874
        %v2002 = vpop.f32.mrb[0].mxu0
        %v2003 = vadd.f32 0.0, %v2002
        %v2004 = vpop.f32.mrb[0].mxu0
        %v2005 = vpop.f32.mrb[0].mxu0
        %v2006 = vadd.f32 0.0, %v2005
        %v2007 = vpop.f32.mrb[0].mxu0
        %2008 = vmatprep.mubr.bf16.mxu0 0
        %2009 = vmatmul.mubr.bf16.gmra.mrb[0].mxu0 %v1875
        %v2010 = vpop.f32.mrb[0].mxu0
        %v2011 = vadd.f32 0.0, %v2010
        %v2012 = vpop.f32.mrb[0].mxu0
        %v2013 = vpop.f32.mrb[0].mxu0
        %v2014 = vadd.f32 0.0, %v2013
        %v2015 = vpop.f32.mrb[0].mxu0
        %2016 = vmatprep.mubr.bf16.mxu0 0
        %2017 = vmatmul.mubr.bf16.gmra.mrb[0].mxu0 %v1876
        %v2018 = vpop.f32.mrb[0].mxu0
        %v2019 = vadd.f32 0.0, %v2018
        %v2020 = vpop.f32.mrb[0].mxu0
        %v2021 = vpop.f32.mrb[0].mxu0
        %v2022 = vadd.f32 0.0, %v2021
        %v2023 = vpop.f32.mrb[0].mxu0
        %2024 = vmatprep.mubr.bf16.mxu0 0
        %2025 = vmatmul.mubr.bf16.gmra.mrb[0].mxu0 %v1877
        %v2026 = vpop.f32.mrb[0].mxu0
        %v2027 = vadd.f32 0.0, %v2026
        %v2028 = vpop.f32.mrb[0].mxu0
        %v2029 = vpop.f32.mrb[0].mxu0
        %v2030 = vadd.f32 0.0, %v2029
        %v2031 = vpop.f32.mrb[0].mxu0
        %2032 = vmatprep.mubr.bf16.mxu0 0
        %2033 = vmatmul.mubr.bf16.gmra.mrb[0].mxu0 %v1878
        %v2034 = vpop.f32.mrb[0].mxu0
        %v2035 = vadd.f32 0.0, %v2034
        %v2036 = vpop.f32.mrb[0].mxu0
        %v2037 = vpop.f32.mrb[0].mxu0
        %v2038 = vadd.f32 0.0, %v2037
        %v2039 = vpop.f32.mrb[0].mxu0
        %2040 = vmatprep.mubr.bf16.mxu0 0
        %2041 = vmatmul.mubr.bf16.gmra.mrb[0].mxu0 %v1879
        %v2042 = vpop.f32.mrb[0].mxu0
        %v2043 = vadd.f32 0.0, %v2042
        %v2044 = vpop.f32.mrb[0].mxu0
        %v2045 = vpop.f32.mrb[0].mxu0
        %v2046 = vadd.f32 0.0, %v2045
        %v2047 = vpop.f32.mrb[0].mxu0
        %2048 = vmatprep.mubr.bf16.mxu0 0
        %2049 = vmatmul.mubr.bf16.gmra.mrb[0].mxu0 %v1880
        %v2050 = vpop.f32.mrb[0].mxu0
        %v2051 = vadd.f32 0.0, %v2050
        %v2052 = vpop.f32.mrb[0].mxu0
        %v2053 = vpop.f32.mrb[0].mxu0
        %v2054 = vadd.f32 0.0, %v2053
        %v2055 = vpop.f32.mrb[0].mxu0
        %2056 = vmatprep.mubr.bf16.mxu0 0
        %2057 = vmatmul.mubr.bf16.gmra.mrb[0].mxu0 %v1881
        %v2058 = vpop.f32.mrb[0].mxu0
        %v2059 = vadd.f32 0.0, %v2058
        %v2060 = vpop.f32.mrb[0].mxu0
        %v2061 = vpop.f32.mrb[0].mxu0
        %v2062 = vadd.f32 0.0, %v2061
        %v2063 = vpop.f32.mrb[0].mxu0
        %2064 = vmatprep.mubr.bf16.mxu0 0
        %2065 = vmatmul.mubr.bf16.gmra.mrb[0].mxu0 %v1882
        %v2066 = vpop.f32.mrb[0].mxu0
        %v2067 = vadd.f32 0.0, %v2066
        %v2068 = vpop.f32.mrb[0].mxu0
        %v2069 = vpop.f32.mrb[0].mxu0
        %v2070 = vadd.f32 0.0, %v2069
        %v2071 = vpop.f32.mrb[0].mxu0
        %2072 = vmatprep.mubr.bf16.mxu0 0
        %2073 = vmatmul.mubr.bf16.gmra.mrb[0].mxu0 %v1883
        %v2074 = vpop.f32.mrb[0].mxu0
        %v2075 = vadd.f32 0.0, %v2074
        %v2076 = vpop.f32.mrb[0].mxu0
        %v2077 = vpop.f32.mrb[0].mxu0
        %v2078 = vadd.f32 0.0, %v2077
        %v2079 = vpop.f32.mrb[0].mxu0
        %2080 = vmatprep.mubr.bf16.mxu0 0
        %2081 = vmatmul.mubr.bf16.gmra.mrb[0].mxu0 %v1884
        %v2082 = vpop.f32.mrb[0].mxu0
        %v2083 = vadd.f32 0.0, %v2082
        %v2084 = vpop.f32.mrb[0].mxu0
        %v2085 = vpop.f32.mrb[0].mxu0
        %v2086 = vadd.f32 0.0, %v2085
        %v2087 = vpop.f32.mrb[0].mxu0
        %2088 = vmatprep.mubr.bf16.mxu0 0
        %2089 = vmatmul.mubr.bf16.gmra.mrb[0].mxu0 %v1885
        %v2090 = vpop.f32.mrb[0].mxu0
        %v2091 = vadd.f32 0.0, %v2090
        %v2092 = vpop.f32.mrb[0].mxu0
        %v2093 = vpop.f32.mrb[0].mxu0
        %v2094 = vadd.f32 0.0, %v2093
        %v2095 = vpop.f32.mrb[0].mxu0
        %2096 = vmatprep.mubr.bf16.mxu0 0
        %2097 = vmatmul.mubr.bf16.gmra.mrb[0].mxu0 %v1886
        %v2098 = vpop.f32.mrb[0].mxu0
        %v2099 = vadd.f32 0.0, %v2098
        %v2100 = vpop.f32.mrb[0].mxu0
        %v2101 = vpop.f32.mrb[0].mxu0
        %v2102 = vadd.f32 0.0, %v2101
        %v2103 = vpop.f32.mrb[0].mxu0
        %2104 = vmatprep.mubr.bf16.mxu0 0
        %2105 = vmatmul.mubr.bf16.gmra.mrb[0].mxu0 %v1887
        %v2106 = vpop.f32.mrb[0].mxu0
        %v2107 = vadd.f32 0.0, %v2106
        %v2108 = vpop.f32.mrb[0].mxu0
        %v2109 = vpop.f32.mrb[0].mxu0
        %v2110 = vadd.f32 0.0, %v2109
        %v2111 = vpop.f32.mrb[0].mxu0
        %2112 = vdwg.mxu0
        %v2113 = vld [vmem:[%s2] sm:$0x1]
        %v2115 = vlaneseq
        %v2116 = vshrl.u32 %v2115, 7
        %v2117 = vsub.s32 0, %v2116
        %v2118 = vrot.slane %v2113, %v2117
        %v2120 = vmul.f32 %v1987, %v2118
        %v2121 = vmul.f32 %v1990, %v2118
        %v2122 = vmul.f32 %v1995, %v2118
        %v2123 = vmul.f32 %v1998, %v2118
        %v2124 = vmul.f32 %v2003, %v2118
        %v2125 = vmul.f32 %v2006, %v2118
        %v2126 = vmul.f32 %v2011, %v2118
        %v2127 = vmul.f32 %v2014, %v2118
        %v2128 = vmul.f32 %v2019, %v2118
        %v2129 = vmul.f32 %v2022, %v2118
        %v2130 = vmul.f32 %v2027, %v2118
        %v2131 = vmul.f32 %v2030, %v2118
        %v2132 = vmul.f32 %v2035, %v2118
        %v2133 = vmul.f32 %v2038, %v2118
        %v2134 = vmul.f32 %v2043, %v2118
        %v2135 = vmul.f32 %v2046, %v2118
        %v2136 = vmul.f32 %v2051, %v2118
        %v2137 = vmul.f32 %v2054, %v2118
        %v2138 = vmul.f32 %v2059, %v2118
        %v2139 = vmul.f32 %v2062, %v2118
        %v2140 = vmul.f32 %v2067, %v2118
        %v2141 = vmul.f32 %v2070, %v2118
        %v2142 = vmul.f32 %v2075, %v2118
        %v2143 = vmul.f32 %v2078, %v2118
        %v2144 = vmul.f32 %v2083, %v2118
        %v2145 = vmul.f32 %v2086, %v2118
        %v2146 = vmul.f32 %v2091, %v2118
        %v2147 = vmul.f32 %v2094, %v2118
        %v2148 = vmul.f32 %v2099, %v2118
        %v2149 = vmul.f32 %v2102, %v2118
        %v2150 = vmul.f32 %v2107, %v2118
        %v2151 = vmul.f32 %v2110, %v2118
        %v2152 = vld [vmem:[%s3] sm:$0x1]
        %v2154 = vlaneseq
        %v2155 = vshrl.u32 %v2154, 7
        %v2156 = vsub.s32 0, %v2155
        %v2157 = vrot.slane %v2152, %v2156
        %v2159 = vadd.f32 %v2120, %v2157
        %v2160 = vadd.f32 %v2121, %v2157
        %v2161 = vadd.f32 %v2122, %v2157
        %v2162 = vadd.f32 %v2123, %v2157
        %v2163 = vadd.f32 %v2124, %v2157
        %v2164 = vadd.f32 %v2125, %v2157
        %v2165 = vadd.f32 %v2126, %v2157
        %v2166 = vadd.f32 %v2127, %v2157
        %v2167 = vadd.f32 %v2128, %v2157
        %v2168 = vadd.f32 %v2129, %v2157
        %v2169 = vadd.f32 %v2130, %v2157
        %v2170 = vadd.f32 %v2131, %v2157
        %v2171 = vadd.f32 %v2132, %v2157
        %v2172 = vadd.f32 %v2133, %v2157
        %v2173 = vadd.f32 %v2134, %v2157
        %v2174 = vadd.f32 %v2135, %v2157
        %v2175 = vadd.f32 %v2136, %v2157
        %v2176 = vadd.f32 %v2137, %v2157
        %v2177 = vadd.f32 %v2138, %v2157
        %v2178 = vadd.f32 %v2139, %v2157
        %v2179 = vadd.f32 %v2140, %v2157
        %v2180 = vadd.f32 %v2141, %v2157
        %v2181 = vadd.f32 %v2142, %v2157
        %v2182 = vadd.f32 %v2143, %v2157
        %v2183 = vadd.f32 %v2144, %v2157
        %v2184 = vadd.f32 %v2145, %v2157
        %v2185 = vadd.f32 %v2146, %v2157
        %v2186 = vadd.f32 %v2147, %v2157
        %v2187 = vadd.f32 %v2148, %v2157
        %v2188 = vadd.f32 %v2149, %v2157
        %v2189 = vadd.f32 %v2150, %v2157
        %v2190 = vadd.f32 %v2151, %v2157
        %v2191 = vmax.f32 %v2159, 0.0
        %v2192 = vmax.f32 %v2160, 0.0
        %v2193 = vmax.f32 %v2161, 0.0
        %v2194 = vmax.f32 %v2162, 0.0
        %v2195 = vmax.f32 %v2163, 0.0
        %v2196 = vmax.f32 %v2164, 0.0
        %v2197 = vmax.f32 %v2165, 0.0
        %v2198 = vmax.f32 %v2166, 0.0
        %v2199 = vmax.f32 %v2167, 0.0
        %v2200 = vmax.f32 %v2168, 0.0
        %v2201 = vmax.f32 %v2169, 0.0
        %v2202 = vmax.f32 %v2170, 0.0
        %v2203 = vmax.f32 %v2171, 0.0
        %v2204 = vmax.f32 %v2172, 0.0
        %v2205 = vmax.f32 %v2173, 0.0
        %v2206 = vmax.f32 %v2174, 0.0
        %v2207 = vmax.f32 %v2175, 0.0
        %v2208 = vmax.f32 %v2176, 0.0
        %v2209 = vmax.f32 %v2177, 0.0
        %v2210 = vmax.f32 %v2178, 0.0
        %v2211 = vmax.f32 %v2179, 0.0
        %v2212 = vmax.f32 %v2180, 0.0
        %v2213 = vmax.f32 %v2181, 0.0
        %v2214 = vmax.f32 %v2182, 0.0
        %v2215 = vmax.f32 %v2183, 0.0
        %v2216 = vmax.f32 %v2184, 0.0
        %v2217 = vmax.f32 %v2185, 0.0
        %v2218 = vmax.f32 %v2186, 0.0
        %v2219 = vmax.f32 %v2187, 0.0
        %v2220 = vmax.f32 %v2188, 0.0
        %v2221 = vmax.f32 %v2189, 0.0
        %v2222 = vmax.f32 %v2190, 0.0
        %2223 = vst [vmem:[%s190] sm:$0xff] %v2191
        %2224 = vst [vmem:[%s190 + $0x8] sm:$0xff] %v2192
        %2225 = vst [vmem:[%s190 + $0x10] sm:$0xff] %v2193
        %2226 = vst [vmem:[%s190 + $0x18] sm:$0xff] %v2194
        %2227 = vst [vmem:[%s190 + $0x20] sm:$0xff] %v2195
        %2228 = vst [vmem:[%s190 + $0x28] sm:$0xff] %v2196
        %2229 = vst [vmem:[%s190 + $0x30] sm:$0xff] %v2197
        %2230 = vst [vmem:[%s190 + $0x38] sm:$0xff] %v2198
        %2231 = vst [vmem:[%s190 + $0x40] sm:$0xff] %v2199
        %2232 = vst [vmem:[%s190 + $0x48] sm:$0xff] %v2200
        %2233 = vst [vmem:[%s190 + $0x50] sm:$0xff] %v2201
        %2234 = vst [vmem:[%s190 + $0x58] sm:$0xff] %v2202
        %2235 = vst [vmem:[%s190 + $0x60] sm:$0xff] %v2203
        %2236 = vst [vmem:[%s190 + $0x68] sm:$0xff] %v2204
        %2237 = vst [vmem:[%s190 + $0x70] sm:$0xff] %v2205
        %2238 = vst [vmem:[%s190 + $0x78] sm:$0xff] %v2206
        %2239 = vst [vmem:[%s190 + $0x80] sm:$0xff] %v2207
        %2240 = vst [vmem:[%s190 + $0x88] sm:$0xff] %v2208
        %2241 = vst [vmem:[%s190 + $0x90] sm:$0xff] %v2209
        %2242 = vst [vmem:[%s190 + $0x98] sm:$0xff] %v2210
        %2243 = vst [vmem:[%s190 + $0xa0] sm:$0xff] %v2211
        %2244 = vst [vmem:[%s190 + $0xa8] sm:$0xff] %v2212
        %2245 = vst [vmem:[%s190 + $0xb0] sm:$0xff] %v2213
        %2246 = vst [vmem:[%s190 + $0xb8] sm:$0xff] %v2214
        %2247 = vst [vmem:[%s190 + $0xc0] sm:$0xff] %v2215
        %2248 = vst [vmem:[%s190 + $0xc8] sm:$0xff] %v2216
        %2249 = vst [vmem:[%s190 + $0xd0] sm:$0xff] %v2217
        %2250 = vst [vmem:[%s190 + $0xd8] sm:$0xff] %v2218
        %2251 = vst [vmem:[%s190 + $0xe0] sm:$0xff] %v2219
        %2252 = vst [vmem:[%s190 + $0xe8] sm:$0xff] %v2220
        %2253 = vst [vmem:[%s190 + $0xf0] sm:$0xff] %v2221
        %2254 = vst [vmem:[%s190 + $0xf8] sm:$0xff] %v2222
        %s2255 = sand.u32 %s115, 1
        %s2256 = scalar_lea.sflag [#allocation4], %s2255
        %s2257 = sand.u32 %s115, 1
        %s2258 = smul.addr %s2257, 256
        %s2259 = scalar_lea.vmem [#allocation3], %s2258
        // Predicated region
        $region37: #{_conv_bn_relu_nhwc_impl.1} parent=35 // pred_check
          %p2260 = pneg %p125
        $region38: #{_conv_bn_relu_nhwc_impl.1} parent=35 // pred_check_branch
          %2262 = sbr.rel (%p2260) target = $region40
        $region39: #{_conv_bn_relu_nhwc_impl.1} parent=35 // pred_region
          %s2264 = ssub.s32 4096, 4096
          %2265 = vsyncadd %s2256, %s2264
          %s2266 = smul.addr %s18, 32
          %s2267 = smul.addr %s2266, 128
          %s2268 = scalar_lea.hbm %s4, %s2267
          %s2269 = sshll.u32 %s2259, 4
          %s2270 = int_to_ptr.vmem [resolvable:$true] %s2269
          %2275 = dma.vmem_to_hbm [thread:$0]  %s2270, 4096, %s2268, %s2256, 128, 128, 8
        $region40: #{_conv_bn_relu_nhwc_impl.1} parent=35 // pred_fallthru
          _
      $region36: #{_conv_bn_relu_nhwc_impl.1} parent=5 // pred_fallthru
        _
      %p2276 = scmp.le.s32.totalorder 2, %s13
      // Predicated region
      $region41: #{_conv_bn_relu_nhwc_impl.1} parent=5 // pred_check
        %p2277 = pneg %p2276
      $region42: #{_conv_bn_relu_nhwc_impl.1} parent=5 // pred_check_branch
        %2279 = sbr.rel (%p2277) target = $region44
      $region43: #{_conv_bn_relu_nhwc_impl.1} parent=5 // pred_region
        %s2280 = ssub.s32 %s13, 2
        // Predicated region
        $region45: #{_conv_bn_relu_nhwc_impl.1} parent=43 // pred_check
          %p2281 = pneg %p131
        $region46: #{_conv_bn_relu_nhwc_impl.1} parent=43 // pred_check_branch
          %2283 = sbr.rel (%p2281) target = $region48
        $region47: #{_conv_bn_relu_nhwc_impl.1} parent=43 // pred_region
          %s2284 = sand.u32 %s116, 1
          %s2285 = scalar_lea.sflag [#allocation4], %s2284
          %s2286 = sand.u32 %s116, 1
          %s2287 = smul.addr %s2286, 256
          %s2288 = scalar_lea.vmem [#allocation3], %s2287
          %2289 = dma.done %s2285, 4096
        $region48: #{_conv_bn_relu_nhwc_impl.1} parent=43 // pred_fallthru
          _
      $region44: #{_conv_bn_relu_nhwc_impl.1} parent=5 // pred_fallthru
        _
    $region6: #{_conv_bn_relu_nhwc_impl.1} parent=1 // loop_footer
      %s17 = sadd.s32 1, %s13
    $region7: #{_conv_bn_relu_nhwc_impl.1} parent=1 // loop_footer_branch
      %12 = sbr.rel target = $region3
    $region8: #{_conv_bn_relu_nhwc_impl.1} parent=1 // loop_exit
      _
    %2290 = vsyncpa [#allocation4], 1
    %s2291 = scalar_lea.sflag [#allocation4], 1
    %2292 = vsyncpa %s2291, 1

</llo_original>
